<compile_context>
chip_gen: v7x
topology: tpu7x:2x2x1
jax: 0.10.0
libtpu: 0.0.40
codegen_flags: <defaults>
</compile_context>

<pallas_src>
import math
from functools import partial

import jax
import jax.numpy as jnp
from jax import lax
from jax.experimental import pallas as pl
from jax.experimental.pallas import tpu as pltpu


# ---------------------------------------------------------------------------
# Fused Pallas kernel: one batch tile per grid step, everything in VMEM.
# ---------------------------------------------------------------------------

def cond_attention_kernel(q_ref, kv_ref, wq_ref, wkv_ref, wo_ref, bo_ref,
                          o_ref, ctx_ref, *, bt, heads, dh_pad, n, m,
                          probs_bf16):
    hp = heads * dh_pad

    # Stack the batch tile so the projections see (bt*N, C) / (bt*M, C) LHS
    # (fills MXU rows, one matmul per projection instead of bt).
    q = q_ref[...].reshape(bt * n, -1)       # bf16 (bt*N, C)
    kv = kv_ref[...].reshape(bt * m, -1)     # bf16 (bt*M, C)

    # Projections: bf16 MXU inputs, f32 accumulation. `scale` is pre-folded
    # into wq; K and V share one matmul against the merged (C, 2*Hp) weight.
    q_p = jnp.dot(q, wq_ref[...],
                  preferred_element_type=jnp.float32).astype(jnp.bfloat16)
    kv_p = jnp.dot(kv, wkv_ref[...],
                   preferred_element_type=jnp.float32).astype(jnp.bfloat16)

    for b in range(bt):
        qb = q_p[b * n:(b + 1) * n, :]        # (N, Hp)
        kb = kv_p[b * m:(b + 1) * m, :hp]     # (M, Hp)
        vb = kv_p[b * m:(b + 1) * m, hp:]     # (M, Hp)
        for h in range(heads):
            lo = h * dh_pad
            qh = qb[:, lo:lo + dh_pad]        # (N, dh_pad) lane-aligned slab
            kh = kb[:, lo:lo + dh_pad]        # (M, dh_pad)
            vh = vb[:, lo:lo + dh_pad]        # (M, dh_pad)

            # Scores (scale already folded into wq). Contract dh_pad with
            # dh_pad — the zero-padded lanes contribute 0, result is exact.
            s = lax.dot_general(qh, kh, (((1,), (1,)), ((), ())),
                                preferred_element_type=jnp.float32)  # (N, M)
            s = s - jnp.max(s, axis=-1, keepdims=True)
            p = jnp.exp(s)

            # Deferred softmax normalization: normalize the (N, dh_pad)
            # context instead of the (N, M) probabilities; divide on the EUP.
            inv_l = pl.reciprocal(jnp.sum(p, axis=-1, keepdims=True),
                                  approx=True)
            p_mm = p.astype(jnp.bfloat16) if probs_bf16 else p
            oh = jnp.dot(p_mm, vh, preferred_element_type=jnp.float32)
            ctx_ref[b * n:(b + 1) * n, lo:lo + dh_pad] = oh * inv_l

    # One K = Hp output projection after the head loop (instead of `heads`
    # tiny-K matmuls); bias add in f32; lane-dense (c_pad) store.
    # Dropout(p=0.0) is the identity.
    ctx = ctx_ref[...].astype(jnp.bfloat16)
    out = jnp.dot(ctx, wo_ref[...], preferred_element_type=jnp.float32)
    out = out + bo_ref[...]
    o_ref[...] = out.reshape(o_ref.shape).astype(o_ref.dtype)


# ---------------------------------------------------------------------------
# Parameter setup (done once, not per forward call)
# ---------------------------------------------------------------------------

def prepare_params(params, heads, lane=128):
    """(in, out) layout, bf16 weights, scale folded into wq, per-head columns
    padded to 128-lane slabs, K/V merged, output projection padded lane-dense."""
    wq, wk, wv, wo, bo = params
    hidden, dim = wq.shape
    dh = hidden // heads
    dh_pad = ((dh + lane - 1) // lane) * lane
    c_pad = ((dim + lane - 1) // lane) * lane
    hp = heads * dh_pad
    scale = dh ** (-0.5)

    def pad_head_cols(w_t):                           # (dim, hidden) -> (dim, Hp)
        w3 = w_t.reshape(dim, heads, dh)
        w3 = jnp.pad(w3, ((0, 0), (0, 0), (0, dh_pad - dh)))
        return w3.reshape(dim, hp)

    wq_t = pad_head_cols(wq.T * scale).astype(jnp.bfloat16)       # (dim, Hp)
    wk_t = pad_head_cols(wk.T).astype(jnp.bfloat16)
    wv_t = pad_head_cols(wv.T).astype(jnp.bfloat16)
    wkv_t = jnp.concatenate([wk_t, wv_t], axis=1)                 # (dim, 2*Hp)

    wo_t = wo.T.reshape(heads, dh, dim)                           # (heads, dh, dim)
    wo_t = jnp.pad(wo_t, ((0, 0), (0, dh_pad - dh), (0, c_pad - dim)))
    wo_t = wo_t.reshape(hp, c_pad).astype(jnp.bfloat16)           # (Hp, c_pad)

    bo_p = jnp.pad(bo, (0, c_pad - dim)).reshape(1, c_pad).astype(jnp.float32)

    return dict(wq=wq_t, wkv=wkv_t, wo=wo_t, bo=bo_p,
                heads=heads, dh_pad=dh_pad, c_pad=c_pad, dim=dim)


def _vmem_limit_bytes(block_b, n, m, c, hp, c_pad):
    bf2, f4 = 2, 4
    io_blocks = 2 * (block_b * n * c * bf2 + block_b * m * c * bf2
                     + block_b * n * c_pad * f4)                   # double-buffered
    weights = 2 * (c * hp * bf2 + c * 2 * hp * bf2 + hp * c_pad * bf2
                   + c_pad * f4)
    scratch = block_b * n * hp * f4
    interm = block_b * (n + 2 * m) * hp * f4 + block_b * n * c_pad * f4
    est = io_blocks + weights + scratch + interm
    return int(min(max(2 * est + (4 << 20), 32 << 20), 64 << 20))


# ---------------------------------------------------------------------------
# Forward wrapper: a single pallas_call
# ---------------------------------------------------------------------------

def cond_attention_forward(q, kv, prepared, block_b=None, probs_bf16=True):
    # probs_bf16=True is best on v6e/v7x; set False on v5e (no bf16 VPU).
    heads = prepared["heads"]
    dh_pad = prepared["dh_pad"]
    c_pad = prepared["c_pad"]
    hp = heads * dh_pad
    B, N, C = q.shape
    _, M, _ = kv.shape
    assert C == prepared["dim"]

    if block_b is None:
        # Keep >=2 parallel grid steps when possible so both v7x TensorCores
        # get work; otherwise stack everything into one step.
        block_b = B // 2 if (B >= 2 and B % 2 == 0) else 1
    assert B % block_b == 0
    grid_b = B // block_b

    # bf16 activations into the kernel: halves DMA bytes, native MXU format.
    q16 = q.astype(jnp.bfloat16)
    kv16 = kv.astype(jnp.bfloat16)

    kernel = partial(cond_attention_kernel, bt=block_b, heads=heads,
                     dh_pad=dh_pad, n=N, m=M, probs_bf16=probs_bf16)

    out_pad = pl.pallas_call(
        kernel,
        out_shape=jax.ShapeDtypeStruct((B, N, c_pad), q.dtype),
        grid=(grid_b,),
        in_specs=[
            pl.BlockSpec((block_b, N, C), lambda b: (b, 0, 0)),    # q
            pl.BlockSpec((block_b, M, C), lambda b: (b, 0, 0)),    # kv
            pl.BlockSpec((C, hp), lambda b: (0, 0)),               # wq (resident)
            pl.BlockSpec((C, 2 * hp), lambda b: (0, 0)),           # wkv (resident)
            pl.BlockSpec((hp, c_pad), lambda b: (0, 0)),           # wo (resident)
            pl.BlockSpec((1, c_pad), lambda b: (0, 0)),            # bias
        ],
        out_specs=pl.BlockSpec((block_b, N, c_pad), lambda b: (b, 0, 0)),
        scratch_shapes=[pltpu.VMEM((block_b * N, hp), jnp.float32)],
        compiler_params=pltpu.CompilerParams(
            dimension_semantics=("parallel",),
            vmem_limit_bytes=_vmem_limit_bytes(block_b, N, M, C, hp, c_pad)),
    )(q16, kv16, prepared["wq"], prepared["wkv"], prepared["wo"], prepared["bo"])

    # Strip lane padding (c_pad -> C) outside the kernel.
    return out_pad[..., :C]


# ---------------------------------------------------------------------------
# Pure-JAX reference (mirrors the PyTorch forward exactly, f32)
# ---------------------------------------------------------------------------

def cond_attention_reference(q, kv, params, heads):
    wq, wk, wv, wo, bo = params
    B, N, C = q.shape
    _, M, _ = kv.shape
    hidden = wq.shape[0]
    dh = hidden // heads
    scale = dh ** (-0.5)

    qp = q @ wq.T
    kp = kv @ wk.T
    vp = kv @ wv.T

    def split(t, L):
        return t.reshape(B, L, heads, dh).transpose(0, 2, 1, 3).reshape(B * heads, L, dh)

    qh, kh, vh = split(qp, N), split(kp, M), split(vp, M)
    sim = jnp.einsum('bid,bjd->bij', qh, kh) * scale
    attn = jax.nn.softmax(sim, axis=-1)
    out = jnp.einsum('bij,bjd->bid', attn, vh)
    out = out.reshape(B, heads, N, dh).transpose(0, 2, 1, 3).reshape(B, N, hidden)
    return out @ wo.T + bo


# ---------------------------------------------------------------------------
# Main
# ---------------------------------------------------------------------------

if __name__ == "__main__":
    # Small shapes consistent with the module.
    B, N, M = 2, 8, 16          # batch, q-seq, kv-seq
    dim = 32                    # C
    heads, dim_head = 4, 8      # hidden_dim = 32
    hidden = heads * dim_head

    key = jax.random.PRNGKey(0)
    kq, kkv, k1, k2, k3, k4, k5 = jax.random.split(key, 7)

    q = jax.random.normal(kq, (B, N, dim), dtype=jnp.float32)
    kv = jax.random.normal(kkv, (B, M, dim), dtype=jnp.float32)

    # Deterministic parameter init (uniform(-1/sqrt(fan_in), 1/sqrt(fan_in)),
    # matching nn.Linear's default scheme in spirit).
    def lin_w(k, out_f, in_f):
        bound = 1.0 / math.sqrt(in_f)
        return jax.random.uniform(k, (out_f, in_f), jnp.float32, -bound, bound)

    wq = lin_w(k1, hidden, dim)
    wk = lin_w(k2, hidden, dim)
    wv = lin_w(k3, hidden, dim)
    wo = lin_w(k4, dim, hidden)
    bo = jax.random.uniform(k5, (dim,), jnp.float32,
                            -1.0 / math.sqrt(hidden), 1.0 / math.sqrt(hidden))
    params = (wq, wk, wv, wo, bo)

    # One-time parameter prep (transpose, scale fold, bf16, lane padding).
    prepared = prepare_params(params, heads)
    out = cond_attention_forward(q, kv, prepared)
    out = jax.block_until_ready(out)

    ref = cond_attention_reference(q, kv, params, heads)
    assert out.shape == (B, N, dim), out.shape
    # bf16 MXU inputs + approx reciprocal -> loosened tolerance vs. the f32 ref.
    err = float(jnp.max(jnp.abs(out - ref)))
    assert err < 5e-2, err

    print("KERNEL_OK")
</pallas_src>

<mosaic_0001>
module attributes {stable_mosaic.version = 11 : i64} {
  func.func @cond_attention_kernel(%arg0: i32, %arg1: memref<1x8x32xbf16, #tpu.memory_space<vmem>>, %arg2: memref<1x16x32xbf16, #tpu.memory_space<vmem>>, %arg3: memref<32x512xbf16, #tpu.memory_space<vmem>>, %arg4: memref<32x1024xbf16, #tpu.memory_space<vmem>>, %arg5: memref<512x128xbf16, #tpu.memory_space<vmem>>, %arg6: memref<1x128xf32, #tpu.memory_space<vmem>>, %arg7: memref<1x8x128xf32, #tpu.memory_space<vmem>>, %arg8: memref<8x512xf32, #tpu.memory_space<vmem>>) attributes {dimension_semantics = [#tpu.dimension_semantics<parallel>], iteration_bounds = array<i64: 2>, scalar_prefetch = 0 : i64, scratch_operands = 1 : i64, tpu.core_type = #tpu.core_type<tc>, window_params = [{transform_indices = @transform_0, window_bounds = array<i64: 1, 8, 32>}, {transform_indices = @transform_1, window_bounds = array<i64: 1, 16, 32>}, {pipeline_mode = #tpu.pipeline_mode<synchronous>, transform_indices = @transform_2, window_bounds = array<i64: 32, 512>}, {pipeline_mode = #tpu.pipeline_mode<synchronous>, transform_indices = @transform_3, window_bounds = array<i64: 32, 1024>}, {pipeline_mode = #tpu.pipeline_mode<synchronous>, transform_indices = @transform_4, window_bounds = array<i64: 512, 128>}, {pipeline_mode = #tpu.pipeline_mode<synchronous>, transform_indices = @transform_5, window_bounds = array<i64: 1, 128>}, {transform_indices = @transform_6, window_bounds = array<i64: 1, 8, 128>}]} {
    %c0 = arith.constant 0 : index
    %c0_0 = arith.constant 0 : index
    %c0_1 = arith.constant 0 : index
    %0 = vector.load %arg1[%c0, %c0_0, %c0_1] : memref<1x8x32xbf16, #tpu.memory_space<vmem>>, vector<1x8x32xbf16>
    %1 = vector.shape_cast %0 : vector<1x8x32xbf16> to vector<8x32xbf16>
    %c0_2 = arith.constant 0 : index
    %c0_3 = arith.constant 0 : index
    %c0_4 = arith.constant 0 : index
    %2 = vector.load %arg2[%c0_2, %c0_3, %c0_4] : memref<1x16x32xbf16, #tpu.memory_space<vmem>>, vector<1x16x32xbf16>
    %3 = vector.shape_cast %2 : vector<1x16x32xbf16> to vector<16x32xbf16>
    %c0_5 = arith.constant 0 : index
    %c0_6 = arith.constant 0 : index
    %4 = vector.load %arg3[%c0_5, %c0_6] : memref<32x512xbf16, #tpu.memory_space<vmem>>, vector<32x512xbf16>
    %cst = arith.constant dense<0.000000e+00> : vector<8x512xf32>
    %5 = tpu.matmul %1, %4, %cst {dimension_numbers = #tpu.dot_dimension_numbers<[1], [0], [0], [1], [0, 0, 1, 1], [], []>} : vector<8x32xbf16>, vector<32x512xbf16>, vector<8x512xf32> -> vector<8x512xf32>
    %6 = arith.truncf %5 : vector<8x512xf32> to vector<8x512xbf16>
    %c0_7 = arith.constant 0 : index
    %c0_8 = arith.constant 0 : index
    %7 = vector.load %arg4[%c0_7, %c0_8] : memref<32x1024xbf16, #tpu.memory_space<vmem>>, vector<32x1024xbf16>
    %cst_9 = arith.constant dense<0.000000e+00> : vector<16x1024xf32>
    %8 = tpu.matmul %3, %7, %cst_9 {dimension_numbers = #tpu.dot_dimension_numbers<[1], [0], [0], [1], [0, 0, 1, 1], [], []>} : vector<16x32xbf16>, vector<32x1024xbf16>, vector<16x1024xf32> -> vector<16x1024xf32>
    %9 = arith.truncf %8 : vector<16x1024xf32> to vector<16x1024xbf16>
    %10 = vector.extract_strided_slice %9 {offsets = [0, 0], sizes = [16, 512], strides = [1, 1]} : vector<16x1024xbf16> to vector<16x512xbf16>
    %11 = vector.extract_strided_slice %9 {offsets = [0, 512], sizes = [16, 512], strides = [1, 1]} : vector<16x1024xbf16> to vector<16x512xbf16>
    %12 = vector.extract_strided_slice %6 {offsets = [0, 0], sizes = [8, 128], strides = [1, 1]} : vector<8x512xbf16> to vector<8x128xbf16>
    %13 = vector.extract_strided_slice %10 {offsets = [0, 0], sizes = [16, 128], strides = [1, 1]} : vector<16x512xbf16> to vector<16x128xbf16>
    %14 = vector.extract_strided_slice %11 {offsets = [0, 0], sizes = [16, 128], strides = [1, 1]} : vector<16x512xbf16> to vector<16x128xbf16>
    %cst_10 = arith.constant dense<0.000000e+00> : vector<8x16xf32>
    %15 = tpu.matmul %12, %13, %cst_10 {dimension_numbers = #tpu.dot_dimension_numbers<[1], [1], [0], [0], [0, 0, 1, 0], [], []>} : vector<8x128xbf16>, vector<16x128xbf16>, vector<8x16xf32> -> vector<8x16xf32>
    %cst_11 = arith.constant dense<0xFF800000> : vector<8xf32>
    %16 = vector.multi_reduction <maximumf>, %15, %cst_11 [1] : vector<8x16xf32> to vector<8xf32>
    %17 = vector.shape_cast %16 : vector<8xf32> to vector<8x1xf32>
    %18 = vector.broadcast %17 : vector<8x1xf32> to vector<8x16xf32>
    %19 = arith.subf %15, %18 : vector<8x16xf32>
    %20 = math.exp %19 : vector<8x16xf32>
    %cst_12 = arith.constant dense<0.000000e+00> : vector<8xf32>
    %21 = vector.multi_reduction <add>, %20, %cst_12 [1] : vector<8x16xf32> to vector<8xf32>
    %22 = vector.shape_cast %21 : vector<8xf32> to vector<8x1xf32>
    %23 = tpu.reciprocal %22 {approx = true} : vector<8x1xf32> -> vector<8x1xf32>
    %24 = arith.truncf %20 : vector<8x16xf32> to vector<8x16xbf16>
    %cst_13 = arith.constant dense<0.000000e+00> : vector<8x128xf32>
    %25 = tpu.matmul %24, %14, %cst_13 {dimension_numbers = #tpu.dot_dimension_numbers<[1], [0], [0], [1], [0, 0, 1, 1], [], []>} : vector<8x16xbf16>, vector<16x128xbf16>, vector<8x128xf32> -> vector<8x128xf32>
    %26 = vector.broadcast %23 : vector<8x1xf32> to vector<8x128xf32>
    %27 = arith.mulf %25, %26 : vector<8x128xf32>
    %c0_14 = arith.constant 0 : index
    %c0_15 = arith.constant 0 : index
    %28 = vector.load %arg8[%c0_14, %c0_15] : memref<8x512xf32, #tpu.memory_space<vmem>>, vector<8x128xf32>
    tpu.vector_store %arg8[%c0_14, %c0_15], %27 {strides = array<i32>} : memref<8x512xf32, #tpu.memory_space<vmem>>, vector<8x128xf32>,
    %29 = vector.extract_strided_slice %6 {offsets = [0, 128], sizes = [8, 128], strides = [1, 1]} : vector<8x512xbf16> to vector<8x128xbf16>
    %30 = vector.extract_strided_slice %10 {offsets = [0, 128], sizes = [16, 128], strides = [1, 1]} : vector<16x512xbf16> to vector<16x128xbf16>
    %31 = vector.extract_strided_slice %11 {offsets = [0, 128], sizes = [16, 128], strides = [1, 1]} : vector<16x512xbf16> to vector<16x128xbf16>
    %cst_16 = arith.constant dense<0.000000e+00> : vector<8x16xf32>
    %32 = tpu.matmul %29, %30, %cst_16 {dimension_numbers = #tpu.dot_dimension_numbers<[1], [1], [0], [0], [0, 0, 1, 0], [], []>} : vector<8x128xbf16>, vector<16x128xbf16>, vector<8x16xf32> -> vector<8x16xf32>
    %cst_17 = arith.constant dense<0xFF800000> : vector<8xf32>
    %33 = vector.multi_reduction <maximumf>, %32, %cst_17 [1] : vector<8x16xf32> to vector<8xf32>
    %34 = vector.shape_cast %33 : vector<8xf32> to vector<8x1xf32>
    %35 = vector.broadcast %34 : vector<8x1xf32> to vector<8x16xf32>
    %36 = arith.subf %32, %35 : vector<8x16xf32>
    %37 = math.exp %36 : vector<8x16xf32>
    %cst_18 = arith.constant dense<0.000000e+00> : vector<8xf32>
    %38 = vector.multi_reduction <add>, %37, %cst_18 [1] : vector<8x16xf32> to vector<8xf32>
    %39 = vector.shape_cast %38 : vector<8xf32> to vector<8x1xf32>
    %40 = tpu.reciprocal %39 {approx = true} : vector<8x1xf32> -> vector<8x1xf32>
    %41 = arith.truncf %37 : vector<8x16xf32> to vector<8x16xbf16>
    %cst_19 = arith.constant dense<0.000000e+00> : vector<8x128xf32>
    %42 = tpu.matmul %41, %31, %cst_19 {dimension_numbers = #tpu.dot_dimension_numbers<[1], [0], [0], [1], [0, 0, 1, 1], [], []>} : vector<8x16xbf16>, vector<16x128xbf16>, vector<8x128xf32> -> vector<8x128xf32>
    %43 = vector.broadcast %40 : vector<8x1xf32> to vector<8x128xf32>
    %44 = arith.mulf %42, %43 : vector<8x128xf32>
    %c0_20 = arith.constant 0 : index
    %c128 = arith.constant 128 : index
    %45 = vector.load %arg8[%c0_20, %c128] : memref<8x512xf32, #tpu.memory_space<vmem>>, vector<8x128xf32>
    tpu.vector_store %arg8[%c0_20, %c128], %44 {strides = array<i32>} : memref<8x512xf32, #tpu.memory_space<vmem>>, vector<8x128xf32>,
    %46 = vector.extract_strided_slice %6 {offsets = [0, 256], sizes = [8, 128], strides = [1, 1]} : vector<8x512xbf16> to vector<8x128xbf16>
    %47 = vector.extract_strided_slice %10 {offsets = [0, 256], sizes = [16, 128], strides = [1, 1]} : vector<16x512xbf16> to vector<16x128xbf16>
    %48 = vector.extract_strided_slice %11 {offsets = [0, 256], sizes = [16, 128], strides = [1, 1]} : vector<16x512xbf16> to vector<16x128xbf16>
    %cst_21 = arith.constant dense<0.000000e+00> : vector<8x16xf32>
    %49 = tpu.matmul %46, %47, %cst_21 {dimension_numbers = #tpu.dot_dimension_numbers<[1], [1], [0], [0], [0, 0, 1, 0], [], []>} : vector<8x128xbf16>, vector<16x128xbf16>, vector<8x16xf32> -> vector<8x16xf32>
    %cst_22 = arith.constant dense<0xFF800000> : vector<8xf32>
    %50 = vector.multi_reduction <maximumf>, %49, %cst_22 [1] : vector<8x16xf32> to vector<8xf32>
    %51 = vector.shape_cast %50 : vector<8xf32> to vector<8x1xf32>
    %52 = vector.broadcast %51 : vector<8x1xf32> to vector<8x16xf32>
    %53 = arith.subf %49, %52 : vector<8x16xf32>
    %54 = math.exp %53 : vector<8x16xf32>
    %cst_23 = arith.constant dense<0.000000e+00> : vector<8xf32>
    %55 = vector.multi_reduction <add>, %54, %cst_23 [1] : vector<8x16xf32> to vector<8xf32>
    %56 = vector.shape_cast %55 : vector<8xf32> to vector<8x1xf32>
    %57 = tpu.reciprocal %56 {approx = true} : vector<8x1xf32> -> vector<8x1xf32>
    %58 = arith.truncf %54 : vector<8x16xf32> to vector<8x16xbf16>
    %cst_24 = arith.constant dense<0.000000e+00> : vector<8x128xf32>
    %59 = tpu.matmul %58, %48, %cst_24 {dimension_numbers = #tpu.dot_dimension_numbers<[1], [0], [0], [1], [0, 0, 1, 1], [], []>} : vector<8x16xbf16>, vector<16x128xbf16>, vector<8x128xf32> -> vector<8x128xf32>
    %60 = vector.broadcast %57 : vector<8x1xf32> to vector<8x128xf32>
    %61 = arith.mulf %59, %60 : vector<8x128xf32>
    %c0_25 = arith.constant 0 : index
    %c256 = arith.constant 256 : index
    %62 = vector.load %arg8[%c0_25, %c256] : memref<8x512xf32, #tpu.memory_space<vmem>>, vector<8x128xf32>
    tpu.vector_store %arg8[%c0_25, %c256], %61 {strides = array<i32>} : memref<8x512xf32, #tpu.memory_space<vmem>>, vector<8x128xf32>,
    %63 = vector.extract_strided_slice %6 {offsets = [0, 384], sizes = [8, 128], strides = [1, 1]} : vector<8x512xbf16> to vector<8x128xbf16>
    %64 = vector.extract_strided_slice %10 {offsets = [0, 384], sizes = [16, 128], strides = [1, 1]} : vector<16x512xbf16> to vector<16x128xbf16>
    %65 = vector.extract_strided_slice %11 {offsets = [0, 384], sizes = [16, 128], strides = [1, 1]} : vector<16x512xbf16> to vector<16x128xbf16>
    %cst_26 = arith.constant dense<0.000000e+00> : vector<8x16xf32>
    %66 = tpu.matmul %63, %64, %cst_26 {dimension_numbers = #tpu.dot_dimension_numbers<[1], [1], [0], [0], [0, 0, 1, 0], [], []>} : vector<8x128xbf16>, vector<16x128xbf16>, vector<8x16xf32> -> vector<8x16xf32>
    %cst_27 = arith.constant dense<0xFF800000> : vector<8xf32>
    %67 = vector.multi_reduction <maximumf>, %66, %cst_27 [1] : vector<8x16xf32> to vector<8xf32>
    %68 = vector.shape_cast %67 : vector<8xf32> to vector<8x1xf32>
    %69 = vector.broadcast %68 : vector<8x1xf32> to vector<8x16xf32>
    %70 = arith.subf %66, %69 : vector<8x16xf32>
    %71 = math.exp %70 : vector<8x16xf32>
    %cst_28 = arith.constant dense<0.000000e+00> : vector<8xf32>
    %72 = vector.multi_reduction <add>, %71, %cst_28 [1] : vector<8x16xf32> to vector<8xf32>
    %73 = vector.shape_cast %72 : vector<8xf32> to vector<8x1xf32>
    %74 = tpu.reciprocal %73 {approx = true} : vector<8x1xf32> -> vector<8x1xf32>
    %75 = arith.truncf %71 : vector<8x16xf32> to vector<8x16xbf16>
    %cst_29 = arith.constant dense<0.000000e+00> : vector<8x128xf32>
    %76 = tpu.matmul %75, %65, %cst_29 {dimension_numbers = #tpu.dot_dimension_numbers<[1], [0], [0], [1], [0, 0, 1, 1], [], []>} : vector<8x16xbf16>, vector<16x128xbf16>, vector<8x128xf32> -> vector<8x128xf32>
    %77 = vector.broadcast %74 : vector<8x1xf32> to vector<8x128xf32>
    %78 = arith.mulf %76, %77 : vector<8x128xf32>
    %c0_30 = arith.constant 0 : index
    %c384 = arith.constant 384 : index
    %79 = vector.load %arg8[%c0_30, %c384] : memref<8x512xf32, #tpu.memory_space<vmem>>, vector<8x128xf32>
    tpu.vector_store %arg8[%c0_30, %c384], %78 {strides = array<i32>} : memref<8x512xf32, #tpu.memory_space<vmem>>, vector<8x128xf32>,
    %c0_31 = arith.constant 0 : index
    %c0_32 = arith.constant 0 : index
    %80 = vector.load %arg8[%c0_31, %c0_32] : memref<8x512xf32, #tpu.memory_space<vmem>>, vector<8x512xf32>
    %81 = arith.truncf %80 : vector<8x512xf32> to vector<8x512xbf16>
    %c0_33 = arith.constant 0 : index
    %c0_34 = arith.constant 0 : index
    %82 = vector.load %arg5[%c0_33, %c0_34] : memref<512x128xbf16, #tpu.memory_space<vmem>>, vector<512x128xbf16>
    %cst_35 = arith.constant dense<0.000000e+00> : vector<8x128xf32>
    %83 = tpu.matmul %81, %82, %cst_35 {dimension_numbers = #tpu.dot_dimension_numbers<[1], [0], [0], [1], [0, 0, 1, 1], [], []>} : vector<8x512xbf16>, vector<512x128xbf16>, vector<8x128xf32> -> vector<8x128xf32>
    %c0_36 = arith.constant 0 : index
    %c0_37 = arith.constant 0 : index
    %84 = vector.load %arg6[%c0_36, %c0_37] : memref<1x128xf32, #tpu.memory_space<vmem>>, vector<1x128xf32>
    %85 = vector.broadcast %84 : vector<1x128xf32> to vector<8x128xf32>
    %86 = arith.addf %83, %85 : vector<8x128xf32>
    %87 = vector.shape_cast %86 : vector<8x128xf32> to vector<1x8x128xf32>
    %c0_38 = arith.constant 0 : index
    %c0_39 = arith.constant 0 : index
    %c0_40 = arith.constant 0 : index
    %88 = vector.load %arg7[%c0_38, %c0_39, %c0_40] : memref<1x8x128xf32, #tpu.memory_space<vmem>>, vector<1x8x128xf32>
    tpu.vector_store %arg7[%c0_38, %c0_39, %c0_40], %87 {strides = array<i32>} : memref<1x8x128xf32, #tpu.memory_space<vmem>>, vector<1x8x128xf32>,
    return
  }
  func.func @transform_0(%arg0: i32) -> (i32, i32, i32) {
    %c0_i32 = arith.constant 0 : i32
    %c0_i32_0 = arith.constant 0 : i32
    %c0_i32_1 = arith.constant 0 : i32
    return %arg0, %c0_i32, %c0_i32_0 : i32, i32, i32
  }
  func.func @transform_1(%arg0: i32) -> (i32, i32, i32) {
    %c0_i32 = arith.constant 0 : i32
    %c0_i32_0 = arith.constant 0 : i32
    %c0_i32_1 = arith.constant 0 : i32
    return %arg0, %c0_i32, %c0_i32_0 : i32, i32, i32
  }
  func.func @transform_2(%arg0: i32) -> (i32, i32) {
    %c0_i32 = arith.constant 0 : i32
    %c0_i32_0 = arith.constant 0 : i32
    %c0_i32_1 = arith.constant 0 : i32
    return %c0_i32, %c0_i32_0 : i32, i32
  }
  func.func @transform_3(%arg0: i32) -> (i32, i32) {
    %c0_i32 = arith.constant 0 : i32
    %c0_i32_0 = arith.constant 0 : i32
    %c0_i32_1 = arith.constant 0 : i32
    return %c0_i32, %c0_i32_0 : i32, i32
  }
  func.func @transform_4(%arg0: i32) -> (i32, i32) {
    %c0_i32 = arith.constant 0 : i32
    %c0_i32_0 = arith.constant 0 : i32
    %c0_i32_1 = arith.constant 0 : i32
    return %c0_i32, %c0_i32_0 : i32, i32
  }
  func.func @transform_5(%arg0: i32) -> (i32, i32) {
    %c0_i32 = arith.constant 0 : i32
    %c0_i32_0 = arith.constant 0 : i32
    %c0_i32_1 = arith.constant 0 : i32
    return %c0_i32, %c0_i32_0 : i32, i32
  }
  func.func @transform_6(%arg0: i32) -> (i32, i32, i32) {
    %c0_i32 = arith.constant 0 : i32
    %c0_i32_0 = arith.constant 0 : i32
    %c0_i32_1 = arith.constant 0 : i32
    return %arg0, %c0_i32, %c0_i32_0 : i32, i32, i32
  }
}

</mosaic_0001>

<llo_original>
// kernel: tpu_custom_call.1
$region0: #{tpu_custom_call.1}
  #allocation0 [shape = 'u32[]', space=smem, size = 0x4, offset = 0x4, fixed_abs, tag = 'smem constant byte address 0x4 - core index']
  #allocation1 [shape = 'u32[144,128]{1,0:T(1,128)}', space=vmem, size = 0x12000, scoped, tag = 'internal scratch']
  #allocation2 [shape = 'f32[8,512]{1,0:T(8,128)}', space=vmem, size = 0x4000, scoped, tag = 'scratch operand']
  %s0 = inlined_call_operand.hbm [shape: bf16[2,8,32], index: 0, kind: input, shape index: {}]
  %s1 = inlined_call_operand.hbm [shape: bf16[2,16,32], index: 1, kind: input, shape index: {}]
  %s2 = inlined_call_operand.hbm [shape: bf16[32,512], index: 2, kind: input, shape index: {}]
  %s3 = inlined_call_operand.hbm [shape: bf16[32,1024], index: 3, kind: input, shape index: {}]
  %s4 = inlined_call_operand.hbm [shape: bf16[512,128], index: 4, kind: input, shape index: {}]
  %s5 = inlined_call_operand.vmem [shape: f32[1,128], index: 5, kind: input, shape index: {}]
  %s6 = inlined_call_operand.hbm [shape: f32[2,8,128], index: 6, kind: output, shape index: {}]
  %s7 = sld [smem:[#allocation0]]
  $region77: #{tpu_custom_call.1} parent=0
    _
  %s9 = ssub.s32 1, %s7
  %s10 = scalar_select 0, %s9, %s7
  $region1: #{tpu_custom_call.1} parent=0
    #allocation3 [shape = 'u8[4096]{0}', space=vmem, size = 0x1000, scoped, tag = 'input window, operand 0']
    #allocation4 [shape = 's32[2]{0}', space=sflag, size = 0x8, scoped, tag = 'scoped memory for tpu_custom_call.1']
    #allocation5 [shape = 's32[2]{0}', space=sflag, size = 0x8, scoped, tag = 'scoped memory for tpu_custom_call.1']
    #allocation6 [shape = 'u8[8192]{0}', space=vmem, size = 0x2000, scoped, tag = 'input window, operand 1']
    #allocation7 [shape = 's32[2]{0}', space=sflag, size = 0x8, scoped, tag = 'scoped memory for tpu_custom_call.1']
    #allocation8 [shape = 'u8[32768]{0}', space=vmem, size = 0x8000, scoped, tag = 'input window, operand 2, single buffered']
    #allocation9 [shape = 'u8[65536]{0}', space=vmem, size = 0x10000, scoped, tag = 'input window, operand 3, single buffered']
    #allocation10 [shape = 's32[1]{0}', space=sflag, size = 0x4, scoped, tag = 'scoped memory for tpu_custom_call.1']
    #allocation11 [shape = 'u8[131072]{0}', space=vmem, size = 0x20000, scoped, tag = 'input window, operand 4, single buffered']
    #allocation12 [shape = 'u8[8192]{0}', space=vmem, size = 0x2000, scoped, tag = 'output window, operand 0']
    %11 = vsyncpa [#allocation4], 0
    %s12 = scalar_lea.sflag [#allocation4], 1
    %13 = vsyncpa %s12, 0
    %14 = vsyncpa [#allocation7], 0
    %s15 = scalar_lea.sflag [#allocation7], 1
    %16 = vsyncpa %s15, 0
    %17 = vsyncpa [#allocation10], 0
    %18 = vsyncpa [#allocation5], 0
    %s19 = scalar_lea.sflag [#allocation5], 1
    %20 = vsyncpa %s19, 0
    loop: start=0, step=1, limit=4
    $region2: #{tpu_custom_call.1} parent=1 // loop_pre_header
      _
    $region3: #{tpu_custom_call.1} parent=1 // loop_header
      %s22 = sphi 0, %s26
      %p23 = scmp.ge.s32.totalorder %s22, 4
      %s32 = sphi 0, %s34
      %s35 = sphi 0, %s32
      %s36 = sphi 0, %s35
      %s52 = sphi 0, %s36
      %s58 = sphi 0, %s60
      %s61 = sphi 0, %s58
      %s62 = sphi 0, %s61
      %s78 = sphi 0, %s62
      %s82 = sphi 0, %s82
      %s84 = sphi 0, %s82
      %s85 = sphi 0, %s84
      %s99 = sphi 0, %s85
      %s103 = sphi 0, %s103
      %s105 = sphi 0, %s103
      %s106 = sphi 0, %s105
      %s120 = sphi 0, %s106
      %s124 = sphi 0, %s124
      %s126 = sphi 0, %s124
      %s127 = sphi 0, %s126
      %s141 = sphi 0, %s127
      %s145 = sphi 0, %s145
      %s147 = sphi 0, %s145
      %s148 = sphi 0, %s147
      %s162 = sphi 0, %s148
      %s168 = sphi 0, %s170
      %s171 = sphi 0, %s168
      %s172 = sphi 0, %s171
      %s188 = sphi 0, %s172
    $region4: #{tpu_custom_call.1} parent=1 // loop_header_branch
      %25 = sbr.rel (%p23) target = $region8
    $region5: #{tpu_custom_call.1} parent=1 // loop_body
      %s27 = ssub.s32 %s22, 1
      %s28 = ssub.s32 %s22, 2
      %s29 = sadd.s32 %s22, 1
      %s30 = ssub.s32 %s22, %s29
      %p31 = scmp.eq.s32.totalorder %s30, 0
      %s33 = sadd.s32 %s32, 1
      %s34 = scalar_select %p31, %s32, %s33
      %p37 = pneg %p31
      %p38 = scmp.eq.s32.totalorder %s22, 1
      %p39 = por %p37, %p38
      %p40 = scmp.ne.s32.totalorder %s32, %s35
      %p41 = scmp.eq.s32.totalorder %s22, 0
      %p42 = por %p40, %p41
      %p43 = scmp.ne.s32.totalorder %s32, %s35
      %p44 = scmp.eq.s32.totalorder %s27, 1
      %p45 = por %p43, %p44
      %p46 = scmp.ne.s32.totalorder %s35, %s36
      %p47 = scmp.eq.s32.totalorder %s27, 0
      %p48 = por %p46, %p47
      %p49 = scmp.ne.s32.totalorder %s35, %s36
      %p50 = scmp.eq.s32.totalorder %s28, 1
      %p51 = por %p49, %p50
      %p53 = scmp.ne.s32.totalorder %s36, %s52
      %p54 = scmp.eq.s32.totalorder %s28, 0
      %p55 = por %p53, %p54
      %s56 = ssub.s32 %s22, %s29
      %p57 = scmp.eq.s32.totalorder %s56, 0
      %s59 = sadd.s32 %s58, 1
      %s60 = scalar_select %p57, %s58, %s59
      %p63 = pneg %p57
      %p64 = scmp.eq.s32.totalorder %s22, 1
      %p65 = por %p63, %p64
      %p66 = scmp.ne.s32.totalorder %s58, %s61
      %p67 = scmp.eq.s32.totalorder %s22, 0
      %p68 = por %p66, %p67
      %p69 = scmp.ne.s32.totalorder %s58, %s61
      %p70 = scmp.eq.s32.totalorder %s27, 1
      %p71 = por %p69, %p70
      %p72 = scmp.ne.s32.totalorder %s61, %s62
      %p73 = scmp.eq.s32.totalorder %s27, 0
      %p74 = por %p72, %p73
      %p75 = scmp.ne.s32.totalorder %s61, %s62
      %p76 = scmp.eq.s32.totalorder %s28, 1
      %p77 = por %p75, %p76
      %p79 = scmp.ne.s32.totalorder %s62, %s78
      %p80 = scmp.eq.s32.totalorder %s28, 0
      %p81 = por %p79, %p80
      %s83 = sadd.s32 %s82, 1
      %p86 = scmp.eq.s32.totalorder %s22, 1
      %p87 = scmp.ne.s32.totalorder %s82, %s84
      %p88 = scmp.eq.s32.totalorder %s22, 0
      %p89 = por %p87, %p88
      %p90 = scmp.ne.s32.totalorder %s82, %s84
      %p91 = scmp.eq.s32.totalorder %s27, 1
      %p92 = por %p90, %p91
      %p93 = scmp.ne.s32.totalorder %s84, %s85
      %p94 = scmp.eq.s32.totalorder %s27, 0
      %p95 = por %p93, %p94
      %p96 = scmp.ne.s32.totalorder %s84, %s85
      %p97 = scmp.eq.s32.totalorder %s28, 1
      %p98 = por %p96, %p97
      %p100 = scmp.ne.s32.totalorder %s85, %s99
      %p101 = scmp.eq.s32.totalorder %s28, 0
      %p102 = por %p100, %p101
      %s104 = sadd.s32 %s103, 1
      %p107 = scmp.eq.s32.totalorder %s22, 1
      %p108 = scmp.ne.s32.totalorder %s103, %s105
      %p109 = scmp.eq.s32.totalorder %s22, 0
      %p110 = por %p108, %p109
      %p111 = scmp.ne.s32.totalorder %s103, %s105
      %p112 = scmp.eq.s32.totalorder %s27, 1
      %p113 = por %p111, %p112
      %p114 = scmp.ne.s32.totalorder %s105, %s106
      %p115 = scmp.eq.s32.totalorder %s27, 0
      %p116 = por %p114, %p115
      %p117 = scmp.ne.s32.totalorder %s105, %s106
      %p118 = scmp.eq.s32.totalorder %s28, 1
      %p119 = por %p117, %p118
      %p121 = scmp.ne.s32.totalorder %s106, %s120
      %p122 = scmp.eq.s32.totalorder %s28, 0
      %p123 = por %p121, %p122
      %s125 = sadd.s32 %s124, 1
      %p128 = scmp.eq.s32.totalorder %s22, 1
      %p129 = scmp.ne.s32.totalorder %s124, %s126
      %p130 = scmp.eq.s32.totalorder %s22, 0
      %p131 = por %p129, %p130
      %p132 = scmp.ne.s32.totalorder %s124, %s126
      %p133 = scmp.eq.s32.totalorder %s27, 1
      %p134 = por %p132, %p133
      %p135 = scmp.ne.s32.totalorder %s126, %s127
      %p136 = scmp.eq.s32.totalorder %s27, 0
      %p137 = por %p135, %p136
      %p138 = scmp.ne.s32.totalorder %s126, %s127
      %p139 = scmp.eq.s32.totalorder %s28, 1
      %p140 = por %p138, %p139
      %p142 = scmp.ne.s32.totalorder %s127, %s141
      %p143 = scmp.eq.s32.totalorder %s28, 0
      %p144 = por %p142, %p143
      %s146 = sadd.s32 %s145, 1
      %p149 = scmp.eq.s32.totalorder %s22, 1
      %p150 = scmp.ne.s32.totalorder %s145, %s147
      %p151 = scmp.eq.s32.totalorder %s22, 0
      %p152 = por %p150, %p151
      %p153 = scmp.ne.s32.totalorder %s145, %s147
      %p154 = scmp.eq.s32.totalorder %s27, 1
      %p155 = por %p153, %p154
      %p156 = scmp.ne.s32.totalorder %s147, %s148
      %p157 = scmp.eq.s32.totalorder %s27, 0
      %p158 = por %p156, %p157
      %p159 = scmp.ne.s32.totalorder %s147, %s148
      %p160 = scmp.eq.s32.totalorder %s28, 1
      %p161 = por %p159, %p160
      %p163 = scmp.ne.s32.totalorder %s148, %s162
      %p164 = scmp.eq.s32.totalorder %s28, 0
      %p165 = por %p163, %p164
      %s166 = ssub.s32 %s22, %s29
      %p167 = scmp.eq.s32.totalorder %s166, 0
      %s169 = sadd.s32 %s168, 1
      %s170 = scalar_select %p167, %s168, %s169
      %p173 = pneg %p167
      %p174 = scmp.eq.s32.totalorder %s22, 1
      %p175 = por %p173, %p174
      %p176 = scmp.ne.s32.totalorder %s168, %s171
      %p177 = scmp.eq.s32.totalorder %s22, 0
      %p178 = por %p176, %p177
      %p179 = scmp.ne.s32.totalorder %s168, %s171
      %p180 = scmp.eq.s32.totalorder %s27, 1
      %p181 = por %p179, %p180
      %p182 = scmp.ne.s32.totalorder %s171, %s172
      %p183 = scmp.eq.s32.totalorder %s27, 0
      %p184 = por %p182, %p183
      %p185 = scmp.ne.s32.totalorder %s171, %s172
      %p186 = scmp.eq.s32.totalorder %s28, 1
      %p187 = por %p185, %p186
      %p189 = scmp.ne.s32.totalorder %s172, %s188
      %p190 = scmp.eq.s32.totalorder %s28, 0
      %p191 = por %p189, %p190
      %p192 = scmp.le.s32.totalorder 1, %s22
      %p193 = scmp.lt.s32.totalorder %s22, 3
      %p194 = pnand %p192, %p193
      %p195 = pneg %p194
      // Predicated region
      $region9: #{tpu_custom_call.1} parent=5 // pred_check
        _
      $region10: #{tpu_custom_call.1} parent=5 // pred_check_branch
        %197 = sbr.rel (%p194) target = $region12
      $region11: #{tpu_custom_call.1} parent=5 // pred_region
        %s198 = ssub.s32 %s22, 1
        // Predicated region
        $region13: #{tpu_custom_call.1} parent=11 // pred_check
          %p199 = pneg %p95
        $region14: #{tpu_custom_call.1} parent=11 // pred_check_branch
          %201 = sbr.rel (%p199) target = $region16
        $region15: #{tpu_custom_call.1} parent=11 // pred_region
          %s203 = ssub.s32 1024, 1024
          %204 = vsyncadd [#allocation7], %s203
          %s205 = sshll.u32 [#allocation8], 4
          %s206 = int_to_ptr.vmem [resolvable:$true] %s205
          %211 = dma.hbm_to_vmem [thread:$0]  %s2, 1024, %s206, [#allocation7], 256, 256, 16
        $region16: #{tpu_custom_call.1} parent=11 // pred_fallthru
          _
        // Predicated region
        $region17: #{tpu_custom_call.1} parent=11 // pred_check
          %p212 = pneg %p116
        $region18: #{tpu_custom_call.1} parent=11 // pred_check_branch
          %214 = sbr.rel (%p212) target = $region20
        $region19: #{tpu_custom_call.1} parent=11 // pred_region
          %s216 = ssub.s32 2048, 2048
          %217 = vsyncadd [#allocation10], %s216
          %s218 = sshll.u32 [#allocation9], 4
          %s219 = int_to_ptr.vmem [resolvable:$true] %s218
          %224 = dma.hbm_to_vmem [thread:$0]  %s3, 2048, %s219, [#allocation10], 512, 512, 32
        $region20: #{tpu_custom_call.1} parent=11 // pred_fallthru
          _
        // Predicated region
        $region21: #{tpu_custom_call.1} parent=11 // pred_check
          %p225 = pneg %p137
        $region22: #{tpu_custom_call.1} parent=11 // pred_check_branch
          %227 = sbr.rel (%p225) target = $region24
        $region23: #{tpu_custom_call.1} parent=11 // pred_region
          %s229 = ssub.s32 4096, 4096
          %230 = vsyncadd [#allocation10], %s229
          %s231 = sshll.u32 [#allocation11], 4
          %s232 = int_to_ptr.vmem [resolvable:$true] %s231
          %237 = dma.hbm_to_vmem [thread:$0]  %s4, 4096, %s232, [#allocation10], 64, 64, 4
        $region24: #{tpu_custom_call.1} parent=11 // pred_fallthru
          _
        // Predicated region
        $region25: #{tpu_custom_call.1} parent=11 // pred_check
          %p238 = pneg %p158
        $region26: #{tpu_custom_call.1} parent=11 // pred_check_branch
          %240 = sbr.rel (%p238) target = $region28
        $region27: #{tpu_custom_call.1} parent=11 // pred_region
          _
        $region28: #{tpu_custom_call.1} parent=11 // pred_fallthru
          _
      $region12: #{tpu_custom_call.1} parent=5 // pred_fallthru
        _
      %p241 = scmp.lt.s32.totalorder %s22, 2
      // Predicated region
      $region29: #{tpu_custom_call.1} parent=5 // pred_check
        %p242 = pneg %p241
      $region30: #{tpu_custom_call.1} parent=5 // pred_check_branch
        %244 = sbr.rel (%p242) target = $region32
      $region31: #{tpu_custom_call.1} parent=5 // pred_region
        // Predicated region
        $region33: #{tpu_custom_call.1} parent=31 // pred_check
          %p245 = pneg %p42
        $region34: #{tpu_custom_call.1} parent=31 // pred_check_branch
          %247 = sbr.rel (%p245) target = $region36
        $region35: #{tpu_custom_call.1} parent=31 // pred_region
          %s248 = sand.u32 %s32, 1
          %s249 = scalar_lea.sflag [#allocation4], %s248
          %s250 = sand.u32 %s32, 1
          %s251 = smul.addr %s250, 4
          %s252 = scalar_lea.vmem [#allocation3], %s251
          %s254 = ssub.s32 64, 64
          %255 = vsyncadd %s249, %s254
          %s256 = smul.addr %s22, 64
          %s257 = scalar_lea.hbm %s0, %s256
          %s259 = sshll.u32 %s252, 4
          %s260 = int_to_ptr.vmem [resolvable:$true] %s259
          %262 = dma.hbm_to_vmem [thread:$0]  %s257, 64, %s260, %s249
        $region36: #{tpu_custom_call.1} parent=31 // pred_fallthru
          _
        // Predicated region
        $region37: #{tpu_custom_call.1} parent=31 // pred_check
          %p263 = pneg %p68
        $region38: #{tpu_custom_call.1} parent=31 // pred_check_branch
          %265 = sbr.rel (%p263) target = $region40
        $region39: #{tpu_custom_call.1} parent=31 // pred_region
          %s266 = sand.u32 %s22, 1
          %s267 = scalar_lea.sflag [#allocation7], %s266
          %s268 = sand.u32 %s58, 1
          %s269 = smul.addr %s268, 8
          %s270 = scalar_lea.vmem [#allocation6], %s269
          %s272 = ssub.s32 128, 128
          %273 = vsyncadd %s267, %s272
          %s274 = smul.addr %s22, 2
          %s275 = smul.addr %s274, 64
          %s276 = scalar_lea.hbm %s1, %s275
          %s277 = sshll.u32 %s270, 4
          %s278 = int_to_ptr.vmem [resolvable:$true] %s277
          %283 = dma.hbm_to_vmem [thread:$0]  %s276, 128, %s278, %s267, 64, 64, 4
        $region40: #{tpu_custom_call.1} parent=31 // pred_fallthru
          _
      $region32: #{tpu_custom_call.1} parent=5 // pred_fallthru
        _
      %p284 = scmp.le.s32.totalorder 1, %s22
      %p285 = scmp.lt.s32.totalorder %s22, 3
      %p286 = pnand %p284, %p285
      %p287 = pneg %p286
      // Predicated region
      $region41: #{tpu_custom_call.1} parent=5 // pred_check
        _
      $region42: #{tpu_custom_call.1} parent=5 // pred_check_branch
        %289 = sbr.rel (%p286) target = $region44
      $region43: #{tpu_custom_call.1} parent=5 // pred_region
        %s290 = ssub.s32 %s22, 1
        %s291 = sand.u32 %s35, 1
        %s292 = scalar_lea.sflag [#allocation4], %s291
        %s293 = sand.u32 %s35, 1
        %s294 = smul.addr %s293, 4
        %s295 = scalar_lea.vmem [#allocation3], %s294
        // Predicated region
        $region45: #{tpu_custom_call.1} parent=43 // pred_check
          %p296 = pneg %p48
        $region46: #{tpu_custom_call.1} parent=43 // pred_check_branch
          %298 = sbr.rel (%p296) target = $region48
        $region47: #{tpu_custom_call.1} parent=43 // pred_region
          %299 = dma.done %s292, 64
        $region48: #{tpu_custom_call.1} parent=43 // pred_fallthru
          _
        %s300 = sand.u32 %s27, 1
        %s301 = scalar_lea.sflag [#allocation7], %s300
        %s302 = sand.u32 %s61, 1
        %s303 = smul.addr %s302, 8
        %s304 = scalar_lea.vmem [#allocation6], %s303
        // Predicated region
        $region49: #{tpu_custom_call.1} parent=43 // pred_check
          %p305 = pneg %p74
        $region50: #{tpu_custom_call.1} parent=43 // pred_check_branch
          %307 = sbr.rel (%p305) target = $region52
        $region51: #{tpu_custom_call.1} parent=43 // pred_region
          %308 = dma.done %s301, 128
        $region52: #{tpu_custom_call.1} parent=43 // pred_fallthru
          _
        // Predicated region
        $region53: #{tpu_custom_call.1} parent=43 // pred_check
          %p309 = pneg %p95
        $region54: #{tpu_custom_call.1} parent=43 // pred_check_branch
          %311 = sbr.rel (%p309) target = $region56
        $region55: #{tpu_custom_call.1} parent=43 // pred_region
          %312 = dma.done [#allocation7], 1024
        $region56: #{tpu_custom_call.1} parent=43 // pred_fallthru
          _
        // Predicated region
        $region57: #{tpu_custom_call.1} parent=43 // pred_check
          %p313 = pneg %p116
        $region58: #{tpu_custom_call.1} parent=43 // pred_check_branch
          %315 = sbr.rel (%p313) target = $region60
        $region59: #{tpu_custom_call.1} parent=43 // pred_region
          %316 = dma.done [#allocation10], 2048
        $region60: #{tpu_custom_call.1} parent=43 // pred_fallthru
          _
        // Predicated region
        $region61: #{tpu_custom_call.1} parent=43 // pred_check
          %p317 = pneg %p137
        $region62: #{tpu_custom_call.1} parent=43 // pred_check_branch
          %319 = sbr.rel (%p317) target = $region64
        $region63: #{tpu_custom_call.1} parent=43 // pred_region
          %320 = dma.done [#allocation10], 4096
        $region64: #{tpu_custom_call.1} parent=43 // pred_fallthru
          _
        %s321 = sand.u32 %s35, 1
        %s322 = scalar_lea.sflag [#allocation4], %s321
        %s323 = sand.u32 %s35, 1
        %s324 = smul.addr %s323, 4
        %s325 = scalar_lea.vmem [#allocation3], %s324
        %p326 = pneg %p48
        %p327 = pneg %p45
        %s328 = sand.u32 %s27, 1
        %s329 = scalar_lea.sflag [#allocation7], %s328
        %s330 = sand.u32 %s61, 1
        %s331 = smul.addr %s330, 8
        %s332 = scalar_lea.vmem [#allocation6], %s331
        %p333 = pneg %p74
        %p334 = pneg %p71
        %p335 = pneg %p95
        %p336 = pneg %p92
        %p337 = pneg %p116
        %p338 = pneg %p113
        %p339 = pneg %p137
        %p340 = pneg %p134
        %p341 = pneg %p158
        %p342 = pneg %p155
        %p343 = pneg %p184
        %p344 = pneg %p181
        %s345 = sand.u32 %s171, 1
        %s346 = scalar_lea.sflag [#allocation5], %s345
        %s347 = sand.u32 %s171, 1
        %s348 = smul.addr %s347, 8
        %s349 = scalar_lea.vmem [#allocation12], %s348
        %v351 = vld [vmem:[%s295] sm:$0xf]
        %v352 = vld [vmem:[%s304] sm:$0xf]
        %v353 = vld [vmem:[%s304 + $0x4] sm:$0xf]
        %v354 = vld [vmem:[#allocation8] sm:$0xff]
        %v355 = vld [vmem:[#allocation8 + $0x8] sm:$0xff]
        %v356 = vld [vmem:[#allocation8 + $0x10] sm:$0xff]
        %v357 = vld [vmem:[#allocation8 + $0x18] sm:$0xff]
        %v358 = vld [vmem:[#allocation8 + $0x20] sm:$0xff]
        %v359 = vld [vmem:[#allocation8 + $0x28] sm:$0xff]
        %v360 = vld [vmem:[#allocation8 + $0x30] sm:$0xff]
        %v361 = vld [vmem:[#allocation8 + $0x38] sm:$0xff]
        %v370 = vunpack.c.l.b16 %v354
        %v371 = vunpack.c.h.b16 %v354
        %v372 = vunpack.c.l.b16 %v355
        %v373 = vunpack.c.h.b16 %v355
        %v374 = vunpack.c.l.b16 %v356
        %v375 = vunpack.c.h.b16 %v356
        %v376 = vunpack.c.l.b16 %v357
        %v377 = vunpack.c.h.b16 %v357
        %v378 = vunpack.c.l.b16 %v358
        %v379 = vunpack.c.h.b16 %v358
        %v380 = vunpack.c.l.b16 %v359
        %v381 = vunpack.c.h.b16 %v359
        %v382 = vunpack.c.l.b16 %v360
        %v383 = vunpack.c.h.b16 %v360
        %v384 = vunpack.c.l.b16 %v361
        %v385 = vunpack.c.h.b16 %v361
        %v386 = vpack.c.b16 %v374, %v370
        %v387 = vpack.c.b16 %v375, %v371
        %v388 = vpack.c.b16 %v376, %v372
        %v389 = vpack.c.b16 %v377, %v373
        %v390 = vpack.c.b16 %v382, %v378
        %v391 = vpack.c.b16 %v383, %v379
        %v392 = vpack.c.b16 %v384, %v380
        %v393 = vpack.c.b16 %v385, %v381
        %vm402 = vcmask 261120
        %v404 = vsel %vm402, %v351, 0
        %406 = vmatprep.subr.bf16.mxu0 %v387
        %407 = vmatpush1.bf16.msra.mxu0 %v386
        %408 = vmatprep.subr.bf16.mxu0 %v391
        %409 = vmatpush1.bf16.msra.mxu0 %v390
        %410 = vmatprep.subr.bf16.mxu0 0
        %411 = vmatpush1.bf16.msra.mxu0 0
        %412 = vmatprep.subr.bf16.mxu0 0
        %413 = vmatpush1.bf16.msra.mxu0 0
        %414 = vmatprep.subr.bf16.mxu0 0
        %415 = vmatpush1.bf16.msra.mxu0 0
        %416 = vmatprep.subr.bf16.mxu0 0
        %417 = vmatpush1.bf16.msra.mxu0 0
        %418 = vmatprep.subr.bf16.mxu0 0
        %419 = vmatpush1.bf16.msra.mxu0 0
        %420 = vmatprep.subr.bf16.mxu0 0
        %421 = vmatpush1.bf16.msra.mxu0 0
        %422 = vmatprep.subr.bf16.mxu0 0
        %423 = vmatpush1.bf16.msra.mxu0 0
        %424 = vmatprep.subr.bf16.mxu0 0
        %425 = vmatpush1.bf16.msra.mxu0 0
        %426 = vmatprep.subr.bf16.mxu0 0
        %427 = vmatpush1.bf16.msra.mxu0 0
        %428 = vmatprep.subr.bf16.mxu0 0
        %429 = vmatpush1.bf16.msra.mxu0 0
        %430 = vmatprep.subr.bf16.mxu0 0
        %431 = vmatpush1.bf16.msra.mxu0 0
        %432 = vmatprep.subr.bf16.mxu0 0
        %433 = vmatpush1.bf16.msra.mxu0 0
        %434 = vmatprep.subr.bf16.mxu0 0
        %435 = vmatpush1.bf16.msra.mxu0 0
        %436 = vmatprep.subr.bf16.mxu0 0
        %437 = vmatpush1.bf16.msra.mxu0 0
        %438 = vmatprep.mubr.bf16.mxu0 0
        %439 = vmatmul.mubr.bf16.gmra.mrb[0].mxu0 %v404
        %v440 = vpop.f32.mrb[0].mxu0
        %v441 = vadd.f32 0.0, %v440
        %v442 = vpop.f32.mrb[0].mxu0
        %v443 = vadd.f32 0.0, %v442
        %v444 = vpop.f32.mrb[0].mxu0
        %v445 = vpop.f32.mrb[0].mxu0
        %446 = vdwg.mxu0
        %447 = vmatprep.subr.bf16.mxu0 %v389
        %448 = vmatpush1.bf16.msra.mxu0 %v388
        %449 = vmatprep.subr.bf16.mxu0 %v393
        %450 = vmatpush1.bf16.msra.mxu0 %v392
        %451 = vmatprep.subr.bf16.mxu0 0
        %452 = vmatpush1.bf16.msra.mxu0 0
        %453 = vmatprep.subr.bf16.mxu0 0
        %454 = vmatpush1.bf16.msra.mxu0 0
        %455 = vmatprep.subr.bf16.mxu0 0
        %456 = vmatpush1.bf16.msra.mxu0 0
        %457 = vmatprep.subr.bf16.mxu0 0
        %458 = vmatpush1.bf16.msra.mxu0 0
        %459 = vmatprep.subr.bf16.mxu0 0
        %460 = vmatpush1.bf16.msra.mxu0 0
        %461 = vmatprep.subr.bf16.mxu0 0
        %462 = vmatpush1.bf16.msra.mxu0 0
        %463 = vmatprep.subr.bf16.mxu0 0
        %464 = vmatpush1.bf16.msra.mxu0 0
        %465 = vmatprep.subr.bf16.mxu0 0
        %466 = vmatpush1.bf16.msra.mxu0 0
        %467 = vmatprep.subr.bf16.mxu0 0
        %468 = vmatpush1.bf16.msra.mxu0 0
        %469 = vmatprep.subr.bf16.mxu0 0
        %470 = vmatpush1.bf16.msra.mxu0 0
        %471 = vmatprep.subr.bf16.mxu0 0
        %472 = vmatpush1.bf16.msra.mxu0 0
        %473 = vmatprep.subr.bf16.mxu0 0
        %474 = vmatpush1.bf16.msra.mxu0 0
        %475 = vmatprep.subr.bf16.mxu0 0
        %476 = vmatpush1.bf16.msra.mxu0 0
        %477 = vmatprep.subr.bf16.mxu0 0
        %478 = vmatpush1.bf16.msra.mxu0 0
        %479 = vmatprep.mubr.bf16.mxu0 0
        %480 = vmatmul.mubr.bf16.gmra.mrb[0].mxu0 %v404
        %v481 = vpop.f32.mrb[0].mxu0
        %v482 = vadd.f32 0.0, %v481
        %v483 = vpop.f32.mrb[0].mxu0
        %v484 = vadd.f32 0.0, %v483
        %v485 = vpop.f32.mrb[0].mxu0
        %v486 = vpop.f32.mrb[0].mxu0
        %487 = vdwg.mxu0
        %v488 = vpack.c.bf16 %v441, %v441
        %v489 = vpack.c.bf16 %v443, %v443
        %v490 = vpack.c.bf16 %v482, %v482
        %v491 = vpack.c.bf16 %v484, %v484
        %v492 = vld [vmem:[#allocation9] sm:$0xff]
        %v493 = vld [vmem:[#allocation9 + $0x8] sm:$0xff]
        %v494 = vld [vmem:[#allocation9 + $0x10] sm:$0xff]
        %v495 = vld [vmem:[#allocation9 + $0x18] sm:$0xff]
        %v496 = vld [vmem:[#allocation9 + $0x20] sm:$0xff]
        %v497 = vld [vmem:[#allocation9 + $0x28] sm:$0xff]
        %v498 = vld [vmem:[#allocation9 + $0x30] sm:$0xff]
        %v499 = vld [vmem:[#allocation9 + $0x38] sm:$0xff]
        %v500 = vld [vmem:[#allocation9 + $0x40] sm:$0xff]
        %v501 = vld [vmem:[#allocation9 + $0x48] sm:$0xff]
        %v502 = vld [vmem:[#allocation9 + $0x50] sm:$0xff]
        %v503 = vld [vmem:[#allocation9 + $0x58] sm:$0xff]
        %v504 = vld [vmem:[#allocation9 + $0x60] sm:$0xff]
        %v505 = vld [vmem:[#allocation9 + $0x68] sm:$0xff]
        %v506 = vld [vmem:[#allocation9 + $0x70] sm:$0xff]
        %v507 = vld [vmem:[#allocation9 + $0x78] sm:$0xff]
        %v510 = vunpack.c.l.b16 %v352
        %v511 = vunpack.c.l.b16 %v353
        %v512 = vpack.c.b16 %v511, %v510
        %v529 = vunpack.c.l.b16 %v492
        %v530 = vunpack.c.h.b16 %v492
        %v531 = vunpack.c.l.b16 %v493
        %v532 = vunpack.c.h.b16 %v493
        %v533 = vunpack.c.l.b16 %v494
        %v534 = vunpack.c.h.b16 %v494
        %v535 = vunpack.c.l.b16 %v495
        %v536 = vunpack.c.h.b16 %v495
        %v537 = vunpack.c.l.b16 %v496
        %v538 = vunpack.c.h.b16 %v496
        %v539 = vunpack.c.l.b16 %v497
        %v540 = vunpack.c.h.b16 %v497
        %v541 = vunpack.c.l.b16 %v498
        %v542 = vunpack.c.h.b16 %v498
        %v543 = vunpack.c.l.b16 %v499
        %v544 = vunpack.c.h.b16 %v499
        %v545 = vunpack.c.l.b16 %v500
        %v546 = vunpack.c.h.b16 %v500
        %v547 = vunpack.c.l.b16 %v501
        %v548 = vunpack.c.h.b16 %v501
        %v549 = vunpack.c.l.b16 %v502
        %v550 = vunpack.c.h.b16 %v502
        %v551 = vunpack.c.l.b16 %v503
        %v552 = vunpack.c.h.b16 %v503
        %v553 = vunpack.c.l.b16 %v504
        %v554 = vunpack.c.h.b16 %v504
        %v555 = vunpack.c.l.b16 %v505
        %v556 = vunpack.c.h.b16 %v505
        %v557 = vunpack.c.l.b16 %v506
        %v558 = vunpack.c.h.b16 %v506
        %v559 = vunpack.c.l.b16 %v507
        %v560 = vunpack.c.h.b16 %v507
        %v561 = vpack.c.b16 %v537, %v529
        %v562 = vpack.c.b16 %v538, %v530
        %v563 = vpack.c.b16 %v539, %v531
        %v564 = vpack.c.b16 %v540, %v532
        %v565 = vpack.c.b16 %v541, %v533
        %v566 = vpack.c.b16 %v542, %v534
        %v567 = vpack.c.b16 %v543, %v535
        %v568 = vpack.c.b16 %v544, %v536
        %v569 = vpack.c.b16 %v553, %v545
        %v570 = vpack.c.b16 %v554, %v546
        %v571 = vpack.c.b16 %v555, %v547
        %v572 = vpack.c.b16 %v556, %v548
        %v573 = vpack.c.b16 %v557, %v549
        %v574 = vpack.c.b16 %v558, %v550
        %v575 = vpack.c.b16 %v559, %v551
        %v576 = vpack.c.b16 %v560, %v552
        %v594 = vsel %vm402, %v512, 0
        %596 = vmatprep.subr.bf16.mxu0 %v562
        %597 = vmatpush1.bf16.msra.mxu0 %v561
        %598 = vmatprep.subr.bf16.mxu0 %v570
        %599 = vmatpush1.bf16.msra.mxu0 %v569
        %600 = vmatprep.subr.bf16.mxu0 0
        %601 = vmatpush1.bf16.msra.mxu0 0
        %602 = vmatprep.subr.bf16.mxu0 0
        %603 = vmatpush1.bf16.msra.mxu0 0
        %604 = vmatprep.subr.bf16.mxu0 0
        %605 = vmatpush1.bf16.msra.mxu0 0
        %606 = vmatprep.subr.bf16.mxu0 0
        %607 = vmatpush1.bf16.msra.mxu0 0
        %608 = vmatprep.subr.bf16.mxu0 0
        %609 = vmatpush1.bf16.msra.mxu0 0
        %610 = vmatprep.subr.bf16.mxu0 0
        %611 = vmatpush1.bf16.msra.mxu0 0
        %612 = vmatprep.subr.bf16.mxu0 0
        %613 = vmatpush1.bf16.msra.mxu0 0
        %614 = vmatprep.subr.bf16.mxu0 0
        %615 = vmatpush1.bf16.msra.mxu0 0
        %616 = vmatprep.subr.bf16.mxu0 0
        %617 = vmatpush1.bf16.msra.mxu0 0
        %618 = vmatprep.subr.bf16.mxu0 0
        %619 = vmatpush1.bf16.msra.mxu0 0
        %620 = vmatprep.subr.bf16.mxu0 0
        %621 = vmatpush1.bf16.msra.mxu0 0
        %622 = vmatprep.subr.bf16.mxu0 0
        %623 = vmatpush1.bf16.msra.mxu0 0
        %624 = vmatprep.subr.bf16.mxu0 0
        %625 = vmatpush1.bf16.msra.mxu0 0
        %626 = vmatprep.subr.bf16.mxu0 0
        %627 = vmatpush1.bf16.msra.mxu0 0
        %628 = vmatprep.mubr.bf16.mxu0 0
        %629 = vmatmul.mubr.bf16.gmra.mrb[0].mxu0 %v594
        %v630 = vpop.f32.mrb[0].mxu0
        %v631 = vadd.f32 0.0, %v630
        %v632 = vpop.f32.mrb[0].mxu0
        %v633 = vadd.f32 0.0, %v632
        %v634 = vpop.f32.mrb[0].mxu0
        %v635 = vadd.f32 0.0, %v634
        %v636 = vpop.f32.mrb[0].mxu0
        %v637 = vadd.f32 0.0, %v636
        %638 = vdwg.mxu0
        %639 = vmatprep.subr.bf16.mxu0 %v564
        %640 = vmatpush1.bf16.msra.mxu0 %v563
        %641 = vmatprep.subr.bf16.mxu0 %v572
        %642 = vmatpush1.bf16.msra.mxu0 %v571
        %643 = vmatprep.subr.bf16.mxu0 0
        %644 = vmatpush1.bf16.msra.mxu0 0
        %645 = vmatprep.subr.bf16.mxu0 0
        %646 = vmatpush1.bf16.msra.mxu0 0
        %647 = vmatprep.subr.bf16.mxu0 0
        %648 = vmatpush1.bf16.msra.mxu0 0
        %649 = vmatprep.subr.bf16.mxu0 0
        %650 = vmatpush1.bf16.msra.mxu0 0
        %651 = vmatprep.subr.bf16.mxu0 0
        %652 = vmatpush1.bf16.msra.mxu0 0
        %653 = vmatprep.subr.bf16.mxu0 0
        %654 = vmatpush1.bf16.msra.mxu0 0
        %655 = vmatprep.subr.bf16.mxu0 0
        %656 = vmatpush1.bf16.msra.mxu0 0
        %657 = vmatprep.subr.bf16.mxu0 0
        %658 = vmatpush1.bf16.msra.mxu0 0
        %659 = vmatprep.subr.bf16.mxu0 0
        %660 = vmatpush1.bf16.msra.mxu0 0
        %661 = vmatprep.subr.bf16.mxu0 0
        %662 = vmatpush1.bf16.msra.mxu0 0
        %663 = vmatprep.subr.bf16.mxu0 0
        %664 = vmatpush1.bf16.msra.mxu0 0
        %665 = vmatprep.subr.bf16.mxu0 0
        %666 = vmatpush1.bf16.msra.mxu0 0
        %667 = vmatprep.subr.bf16.mxu0 0
        %668 = vmatpush1.bf16.msra.mxu0 0
        %669 = vmatprep.subr.bf16.mxu0 0
        %670 = vmatpush1.bf16.msra.mxu0 0
        %671 = vmatprep.mubr.bf16.mxu0 0
        %672 = vmatmul.mubr.bf16.gmra.mrb[0].mxu0 %v594
        %v673 = vpop.f32.mrb[0].mxu0
        %v674 = vadd.f32 0.0, %v673
        %v675 = vpop.f32.mrb[0].mxu0
        %v676 = vadd.f32 0.0, %v675
        %v677 = vpop.f32.mrb[0].mxu0
        %v678 = vadd.f32 0.0, %v677
        %v679 = vpop.f32.mrb[0].mxu0
        %v680 = vadd.f32 0.0, %v679
        %681 = vdwg.mxu0
        %682 = vmatprep.subr.bf16.mxu0 %v566
        %683 = vmatpush1.bf16.msra.mxu0 %v565
        %684 = vmatprep.subr.bf16.mxu0 %v574
        %685 = vmatpush1.bf16.msra.mxu0 %v573
        %686 = vmatprep.subr.bf16.mxu0 0
        %687 = vmatpush1.bf16.msra.mxu0 0
        %688 = vmatprep.subr.bf16.mxu0 0
        %689 = vmatpush1.bf16.msra.mxu0 0
        %690 = vmatprep.subr.bf16.mxu0 0
        %691 = vmatpush1.bf16.msra.mxu0 0
        %692 = vmatprep.subr.bf16.mxu0 0
        %693 = vmatpush1.bf16.msra.mxu0 0
        %694 = vmatprep.subr.bf16.mxu0 0
        %695 = vmatpush1.bf16.msra.mxu0 0
        %696 = vmatprep.subr.bf16.mxu0 0
        %697 = vmatpush1.bf16.msra.mxu0 0
        %698 = vmatprep.subr.bf16.mxu0 0
        %699 = vmatpush1.bf16.msra.mxu0 0
        %700 = vmatprep.subr.bf16.mxu0 0
        %701 = vmatpush1.bf16.msra.mxu0 0
        %702 = vmatprep.subr.bf16.mxu0 0
        %703 = vmatpush1.bf16.msra.mxu0 0
        %704 = vmatprep.subr.bf16.mxu0 0
        %705 = vmatpush1.bf16.msra.mxu0 0
        %706 = vmatprep.subr.bf16.mxu0 0
        %707 = vmatpush1.bf16.msra.mxu0 0
        %708 = vmatprep.subr.bf16.mxu0 0
        %709 = vmatpush1.bf16.msra.mxu0 0
        %710 = vmatprep.subr.bf16.mxu0 0
        %711 = vmatpush1.bf16.msra.mxu0 0
        %712 = vmatprep.subr.bf16.mxu0 0
        %713 = vmatpush1.bf16.msra.mxu0 0
        %714 = vmatprep.mubr.bf16.mxu0 0
        %715 = vmatmul.mubr.bf16.gmra.mrb[0].mxu0 %v594
        %v716 = vpop.f32.mrb[0].mxu0
        %v717 = vadd.f32 0.0, %v716
        %v718 = vpop.f32.mrb[0].mxu0
        %v719 = vadd.f32 0.0, %v718
        %v720 = vpop.f32.mrb[0].mxu0
        %v721 = vadd.f32 0.0, %v720
        %v722 = vpop.f32.mrb[0].mxu0
        %v723 = vadd.f32 0.0, %v722
        %724 = vdwg.mxu0
        %725 = vmatprep.subr.bf16.mxu0 %v568
        %726 = vmatpush1.bf16.msra.mxu0 %v567
        %727 = vmatprep.subr.bf16.mxu0 %v576
        %728 = vmatpush1.bf16.msra.mxu0 %v575
        %729 = vmatprep.subr.bf16.mxu0 0
        %730 = vmatpush1.bf16.msra.mxu0 0
        %731 = vmatprep.subr.bf16.mxu0 0
        %732 = vmatpush1.bf16.msra.mxu0 0
        %733 = vmatprep.subr.bf16.mxu0 0
        %734 = vmatpush1.bf16.msra.mxu0 0
        %735 = vmatprep.subr.bf16.mxu0 0
        %736 = vmatpush1.bf16.msra.mxu0 0
        %737 = vmatprep.subr.bf16.mxu0 0
        %738 = vmatpush1.bf16.msra.mxu0 0
        %739 = vmatprep.subr.bf16.mxu0 0
        %740 = vmatpush1.bf16.msra.mxu0 0
        %741 = vmatprep.subr.bf16.mxu0 0
        %742 = vmatpush1.bf16.msra.mxu0 0
        %743 = vmatprep.subr.bf16.mxu0 0
        %744 = vmatpush1.bf16.msra.mxu0 0
        %745 = vmatprep.subr.bf16.mxu0 0
        %746 = vmatpush1.bf16.msra.mxu0 0
        %747 = vmatprep.subr.bf16.mxu0 0
        %748 = vmatpush1.bf16.msra.mxu0 0
        %749 = vmatprep.subr.bf16.mxu0 0
        %750 = vmatpush1.bf16.msra.mxu0 0
        %751 = vmatprep.subr.bf16.mxu0 0
        %752 = vmatpush1.bf16.msra.mxu0 0
        %753 = vmatprep.subr.bf16.mxu0 0
        %754 = vmatpush1.bf16.msra.mxu0 0
        %755 = vmatprep.subr.bf16.mxu0 0
        %756 = vmatpush1.bf16.msra.mxu0 0
        %757 = vmatprep.mubr.bf16.mxu0 0
        %758 = vmatmul.mubr.bf16.gmra.mrb[0].mxu0 %v594
        %v759 = vpop.f32.mrb[0].mxu0
        %v760 = vadd.f32 0.0, %v759
        %v761 = vpop.f32.mrb[0].mxu0
        %v762 = vadd.f32 0.0, %v761
        %v763 = vpop.f32.mrb[0].mxu0
        %v764 = vadd.f32 0.0, %v763
        %v765 = vpop.f32.mrb[0].mxu0
        %v766 = vadd.f32 0.0, %v765
        %767 = vdwg.mxu0
        %v768 = vpack.c.bf16 %v635, %v631
        %v769 = vpack.c.bf16 %v637, %v633
        %v770 = vpack.c.bf16 %v678, %v674
        %v771 = vpack.c.bf16 %v680, %v676
        %v772 = vpack.c.bf16 %v721, %v717
        %v773 = vpack.c.bf16 %v723, %v719
        %v774 = vpack.c.bf16 %v764, %v760
        %v775 = vpack.c.bf16 %v766, %v762
        %776 = vmatprep.subr.bf16.mxu0 0
        %777 = vmatpush1.bf16.xpose.msra.mxu0 %v768
        %778 = vmatprep.subr.bf16.mxu0 0
        %779 = vmatpush1.bf16.xpose.msra.mxu0 0
        %780 = vmatprep.subr.bf16.mxu0 0
        %781 = vmatpush1.bf16.xpose.msra.mxu0 0
        %782 = vmatprep.subr.bf16.mxu0 0
        %783 = vmatpush1.bf16.xpose.msra.mxu0 0
        %784 = vmatprep.subr.bf16.mxu0 0
        %785 = vmatpush1.bf16.xpose.msra.mxu0 0
        %786 = vmatprep.subr.bf16.mxu0 0
        %787 = vmatpush1.bf16.xpose.msra.mxu0 0
        %788 = vmatprep.subr.bf16.mxu0 0
        %789 = vmatpush1.bf16.xpose.msra.mxu0 0
        %790 = vmatprep.subr.bf16.mxu0 0
        %791 = vmatpush1.bf16.xpose.msra.mxu0 0
        %792 = vmatprep.subr.bf16.mxu0 0
        %793 = vmatpush1.bf16.xpose.msra.mxu0 0
        %794 = vmatprep.subr.bf16.mxu0 0
        %795 = vmatpush1.bf16.xpose.msra.mxu0 0
        %796 = vmatprep.subr.bf16.mxu0 0
        %797 = vmatpush1.bf16.xpose.msra.mxu0 0
        %798 = vmatprep.subr.bf16.mxu0 0
        %799 = vmatpush1.bf16.xpose.msra.mxu0 0
        %800 = vmatprep.subr.bf16.mxu0 0
        %801 = vmatpush1.bf16.xpose.msra.mxu0 0
        %802 = vmatprep.subr.bf16.mxu0 0
        %803 = vmatpush1.bf16.xpose.msra.mxu0 0
        %804 = vmatprep.subr.bf16.mxu0 0
        %805 = vmatpush1.bf16.xpose.msra.mxu0 0
        %806 = vmatprep.subr.bf16.mxu0 0
        %807 = vmatpush1.bf16.xpose.msra.mxu0 0
        %808 = vmatprep.mubr.bf16.mxu0 0
        %809 = vmatmul.mubr.bf16.gmra.mrb[0].mxu0 %v488
        %v810 = vpop.f32.mrb[0].mxu0
        %v811 = vadd.f32 0.0, %v810
        %v812 = vpop.f32.mrb[0].mxu0
        %v813 = vpop.f32.mrb[0].mxu0
        %v814 = vpop.f32.mrb[0].mxu0
        %815 = vdwg.mxu0
        %vm816 = vcmask 130048
        %v817 = vsel %vm816, %v811, -inf
        %818 = vmax.xlane.f32.xlu0 %v817
        %v819 = vpop.xlane.xlu0 %818
        %v820 = vsub.f32 %v811, %v819
        %v821 = vmul.f32 %v820, 1.442695
        %v822 = vpow.pop %v821
        %v823 = vsel %vm816, %v822, 0.0
        %824 = vadd.xlane.f32.xlu0 %v823
        %v825 = vpop.xlane.xlu0 %824
        %v826 = vrcp.pop %v825
        %v827 = vpack.c.bf16 %v822, %v822
        %v829 = vsel %vm816, %v827, 0
        %831 = vmatprep.subr.bf16.mxu0 0
        %832 = vmatpush1.bf16.msra.mxu0 %v772
        %833 = vmatprep.subr.bf16.mxu0 0
        %834 = vmatpush1.bf16.msra.mxu0 0
        %835 = vmatprep.subr.bf16.mxu0 0
        %836 = vmatpush1.bf16.msra.mxu0 0
        %837 = vmatprep.subr.bf16.mxu0 0
        %838 = vmatpush1.bf16.msra.mxu0 0
        %839 = vmatprep.subr.bf16.mxu0 0
        %840 = vmatpush1.bf16.msra.mxu0 0
        %841 = vmatprep.subr.bf16.mxu0 0
        %842 = vmatpush1.bf16.msra.mxu0 0
        %843 = vmatprep.subr.bf16.mxu0 0
        %844 = vmatpush1.bf16.msra.mxu0 0
        %845 = vmatprep.subr.bf16.mxu0 0
        %846 = vmatpush1.bf16.msra.mxu0 0
        %847 = vmatprep.subr.bf16.mxu0 0
        %848 = vmatpush1.bf16.msra.mxu0 0
        %849 = vmatprep.subr.bf16.mxu0 0
        %850 = vmatpush1.bf16.msra.mxu0 0
        %851 = vmatprep.subr.bf16.mxu0 0
        %852 = vmatpush1.bf16.msra.mxu0 0
        %853 = vmatprep.subr.bf16.mxu0 0
        %854 = vmatpush1.bf16.msra.mxu0 0
        %855 = vmatprep.subr.bf16.mxu0 0
        %856 = vmatpush1.bf16.msra.mxu0 0
        %857 = vmatprep.subr.bf16.mxu0 0
        %858 = vmatpush1.bf16.msra.mxu0 0
        %859 = vmatprep.subr.bf16.mxu0 0
        %860 = vmatpush1.bf16.msra.mxu0 0
        %861 = vmatprep.subr.bf16.mxu0 0
        %862 = vmatpush1.bf16.msra.mxu0 0
        %863 = vmatprep.mubr.bf16.mxu0 0
        %864 = vmatmul.mubr.bf16.gmra.mrb[0].mxu0 %v829
        %v865 = vpop.f32.mrb[0].mxu0
        %v866 = vadd.f32 0.0, %v865
        %v867 = vpop.f32.mrb[0].mxu0
        %v868 = vpop.f32.mrb[0].mxu0
        %v869 = vpop.f32.mrb[0].mxu0
        %870 = vdwg.mxu0
        %v871 = vmul.f32 %v866, %v826
        %872 = vst [vmem:[#allocation2] sm:$0xff] %v871
        %873 = vmatprep.subr.bf16.mxu0 0
        %874 = vmatpush1.bf16.xpose.msra.mxu0 %v769
        %875 = vmatprep.subr.bf16.mxu0 0
        %876 = vmatpush1.bf16.xpose.msra.mxu0 0
        %877 = vmatprep.subr.bf16.mxu0 0
        %878 = vmatpush1.bf16.xpose.msra.mxu0 0
        %879 = vmatprep.subr.bf16.mxu0 0
        %880 = vmatpush1.bf16.xpose.msra.mxu0 0
        %881 = vmatprep.subr.bf16.mxu0 0
        %882 = vmatpush1.bf16.xpose.msra.mxu0 0
        %883 = vmatprep.subr.bf16.mxu0 0
        %884 = vmatpush1.bf16.xpose.msra.mxu0 0
        %885 = vmatprep.subr.bf16.mxu0 0
        %886 = vmatpush1.bf16.xpose.msra.mxu0 0
        %887 = vmatprep.subr.bf16.mxu0 0
        %888 = vmatpush1.bf16.xpose.msra.mxu0 0
        %889 = vmatprep.subr.bf16.mxu0 0
        %890 = vmatpush1.bf16.xpose.msra.mxu0 0
        %891 = vmatprep.subr.bf16.mxu0 0
        %892 = vmatpush1.bf16.xpose.msra.mxu0 0
        %893 = vmatprep.subr.bf16.mxu0 0
        %894 = vmatpush1.bf16.xpose.msra.mxu0 0
        %895 = vmatprep.subr.bf16.mxu0 0
        %896 = vmatpush1.bf16.xpose.msra.mxu0 0
        %897 = vmatprep.subr.bf16.mxu0 0
        %898 = vmatpush1.bf16.xpose.msra.mxu0 0
        %899 = vmatprep.subr.bf16.mxu0 0
        %900 = vmatpush1.bf16.xpose.msra.mxu0 0
        %901 = vmatprep.subr.bf16.mxu0 0
        %902 = vmatpush1.bf16.xpose.msra.mxu0 0
        %903 = vmatprep.subr.bf16.mxu0 0
        %904 = vmatpush1.bf16.xpose.msra.mxu0 0
        %905 = vmatprep.mubr.bf16.mxu0 0
        %906 = vmatmul.mubr.bf16.gmra.mrb[0].mxu0 %v489
        %v907 = vpop.f32.mrb[0].mxu0
        %v908 = vadd.f32 0.0, %v907
        %v909 = vpop.f32.mrb[0].mxu0
        %v910 = vpop.f32.mrb[0].mxu0
        %v911 = vpop.f32.mrb[0].mxu0
        %912 = vdwg.mxu0
        %v913 = vsel %vm816, %v908, -inf
        %914 = vmax.xlane.f32.xlu0 %v913
        %v915 = vpop.xlane.xlu0 %914
        %v916 = vsub.f32 %v908, %v915
        %v917 = vmul.f32 %v916, 1.442695
        %v918 = vpow.pop %v917
        %v919 = vsel %vm816, %v918, 0.0
        %920 = vadd.xlane.f32.xlu0 %v919
        %v921 = vpop.xlane.xlu0 %920
        %v922 = vrcp.pop %v921
        %v923 = vpack.c.bf16 %v918, %v918
        %v925 = vsel %vm816, %v923, 0
        %927 = vmatprep.subr.bf16.mxu0 0
        %928 = vmatpush1.bf16.msra.mxu0 %v773
        %929 = vmatprep.subr.bf16.mxu0 0
        %930 = vmatpush1.bf16.msra.mxu0 0
        %931 = vmatprep.subr.bf16.mxu0 0
        %932 = vmatpush1.bf16.msra.mxu0 0
        %933 = vmatprep.subr.bf16.mxu0 0
        %934 = vmatpush1.bf16.msra.mxu0 0
        %935 = vmatprep.subr.bf16.mxu0 0
        %936 = vmatpush1.bf16.msra.mxu0 0
        %937 = vmatprep.subr.bf16.mxu0 0
        %938 = vmatpush1.bf16.msra.mxu0 0
        %939 = vmatprep.subr.bf16.mxu0 0
        %940 = vmatpush1.bf16.msra.mxu0 0
        %941 = vmatprep.subr.bf16.mxu0 0
        %942 = vmatpush1.bf16.msra.mxu0 0
        %943 = vmatprep.subr.bf16.mxu0 0
        %944 = vmatpush1.bf16.msra.mxu0 0
        %945 = vmatprep.subr.bf16.mxu0 0
        %946 = vmatpush1.bf16.msra.mxu0 0
        %947 = vmatprep.subr.bf16.mxu0 0
        %948 = vmatpush1.bf16.msra.mxu0 0
        %949 = vmatprep.subr.bf16.mxu0 0
        %950 = vmatpush1.bf16.msra.mxu0 0
        %951 = vmatprep.subr.bf16.mxu0 0
        %952 = vmatpush1.bf16.msra.mxu0 0
        %953 = vmatprep.subr.bf16.mxu0 0
        %954 = vmatpush1.bf16.msra.mxu0 0
        %955 = vmatprep.subr.bf16.mxu0 0
        %956 = vmatpush1.bf16.msra.mxu0 0
        %957 = vmatprep.subr.bf16.mxu0 0
        %958 = vmatpush1.bf16.msra.mxu0 0
        %959 = vmatprep.mubr.bf16.mxu0 0
        %960 = vmatmul.mubr.bf16.gmra.mrb[0].mxu0 %v925
        %v961 = vpop.f32.mrb[0].mxu0
        %v962 = vadd.f32 0.0, %v961
        %v963 = vpop.f32.mrb[0].mxu0
        %v964 = vpop.f32.mrb[0].mxu0
        %v965 = vpop.f32.mrb[0].mxu0
        %966 = vdwg.mxu0
        %v967 = vmul.f32 %v962, %v922
        %968 = vst [vmem:[#allocation2 + $0x8] sm:$0xff] %v967
        %969 = vmatprep.subr.bf16.mxu0 0
        %970 = vmatpush1.bf16.xpose.msra.mxu0 %v770
        %971 = vmatprep.subr.bf16.mxu0 0
        %972 = vmatpush1.bf16.xpose.msra.mxu0 0
        %973 = vmatprep.subr.bf16.mxu0 0
        %974 = vmatpush1.bf16.xpose.msra.mxu0 0
        %975 = vmatprep.subr.bf16.mxu0 0
        %976 = vmatpush1.bf16.xpose.msra.mxu0 0
        %977 = vmatprep.subr.bf16.mxu0 0
        %978 = vmatpush1.bf16.xpose.msra.mxu0 0
        %979 = vmatprep.subr.bf16.mxu0 0
        %980 = vmatpush1.bf16.xpose.msra.mxu0 0
        %981 = vmatprep.subr.bf16.mxu0 0
        %982 = vmatpush1.bf16.xpose.msra.mxu0 0
        %983 = vmatprep.subr.bf16.mxu0 0
        %984 = vmatpush1.bf16.xpose.msra.mxu0 0
        %985 = vmatprep.subr.bf16.mxu0 0
        %986 = vmatpush1.bf16.xpose.msra.mxu0 0
        %987 = vmatprep.subr.bf16.mxu0 0
        %988 = vmatpush1.bf16.xpose.msra.mxu0 0
        %989 = vmatprep.subr.bf16.mxu0 0
        %990 = vmatpush1.bf16.xpose.msra.mxu0 0
        %991 = vmatprep.subr.bf16.mxu0 0
        %992 = vmatpush1.bf16.xpose.msra.mxu0 0
        %993 = vmatprep.subr.bf16.mxu0 0
        %994 = vmatpush1.bf16.xpose.msra.mxu0 0
        %995 = vmatprep.subr.bf16.mxu0 0
        %996 = vmatpush1.bf16.xpose.msra.mxu0 0
        %997 = vmatprep.subr.bf16.mxu0 0
        %998 = vmatpush1.bf16.xpose.msra.mxu0 0
        %999 = vmatprep.subr.bf16.mxu0 0
        %1000 = vmatpush1.bf16.xpose.msra.mxu0 0
        %1001 = vmatprep.mubr.bf16.mxu0 0
        %1002 = vmatmul.mubr.bf16.gmra.mrb[0].mxu0 %v490
        %v1003 = vpop.f32.mrb[0].mxu0
        %v1004 = vadd.f32 0.0, %v1003
        %v1005 = vpop.f32.mrb[0].mxu0
        %v1006 = vpop.f32.mrb[0].mxu0
        %v1007 = vpop.f32.mrb[0].mxu0
        %1008 = vdwg.mxu0
        %v1009 = vsel %vm816, %v1004, -inf
        %1010 = vmax.xlane.f32.xlu0 %v1009
        %v1011 = vpop.xlane.xlu0 %1010
        %v1012 = vsub.f32 %v1004, %v1011
        %v1013 = vmul.f32 %v1012, 1.442695
        %v1014 = vpow.pop %v1013
        %v1015 = vsel %vm816, %v1014, 0.0
        %1016 = vadd.xlane.f32.xlu0 %v1015
        %v1017 = vpop.xlane.xlu0 %1016
        %v1018 = vrcp.pop %v1017
        %v1019 = vpack.c.bf16 %v1014, %v1014
        %v1021 = vsel %vm816, %v1019, 0
        %1023 = vmatprep.subr.bf16.mxu0 0
        %1024 = vmatpush1.bf16.msra.mxu0 %v774
        %1025 = vmatprep.subr.bf16.mxu0 0
        %1026 = vmatpush1.bf16.msra.mxu0 0
        %1027 = vmatprep.subr.bf16.mxu0 0
        %1028 = vmatpush1.bf16.msra.mxu0 0
        %1029 = vmatprep.subr.bf16.mxu0 0
        %1030 = vmatpush1.bf16.msra.mxu0 0
        %1031 = vmatprep.subr.bf16.mxu0 0
        %1032 = vmatpush1.bf16.msra.mxu0 0
        %1033 = vmatprep.subr.bf16.mxu0 0
        %1034 = vmatpush1.bf16.msra.mxu0 0
        %1035 = vmatprep.subr.bf16.mxu0 0
        %1036 = vmatpush1.bf16.msra.mxu0 0
        %1037 = vmatprep.subr.bf16.mxu0 0
        %1038 = vmatpush1.bf16.msra.mxu0 0
        %1039 = vmatprep.subr.bf16.mxu0 0
        %1040 = vmatpush1.bf16.msra.mxu0 0
        %1041 = vmatprep.subr.bf16.mxu0 0
        %1042 = vmatpush1.bf16.msra.mxu0 0
        %1043 = vmatprep.subr.bf16.mxu0 0
        %1044 = vmatpush1.bf16.msra.mxu0 0
        %1045 = vmatprep.subr.bf16.mxu0 0
        %1046 = vmatpush1.bf16.msra.mxu0 0
        %1047 = vmatprep.subr.bf16.mxu0 0
        %1048 = vmatpush1.bf16.msra.mxu0 0
        %1049 = vmatprep.subr.bf16.mxu0 0
        %1050 = vmatpush1.bf16.msra.mxu0 0
        %1051 = vmatprep.subr.bf16.mxu0 0
        %1052 = vmatpush1.bf16.msra.mxu0 0
        %1053 = vmatprep.subr.bf16.mxu0 0
        %1054 = vmatpush1.bf16.msra.mxu0 0
        %1055 = vmatprep.mubr.bf16.mxu0 0
        %1056 = vmatmul.mubr.bf16.gmra.mrb[0].mxu0 %v1021
        %v1057 = vpop.f32.mrb[0].mxu0
        %v1058 = vadd.f32 0.0, %v1057
        %v1059 = vpop.f32.mrb[0].mxu0
        %v1060 = vpop.f32.mrb[0].mxu0
        %v1061 = vpop.f32.mrb[0].mxu0
        %1062 = vdwg.mxu0
        %v1063 = vmul.f32 %v1058, %v1018
        %1064 = vst [vmem:[#allocation2 + $0x10] sm:$0xff] %v1063
        %1065 = vmatprep.subr.bf16.mxu0 0
        %1066 = vmatpush1.bf16.xpose.msra.mxu0 %v771
        %1067 = vmatprep.subr.bf16.mxu0 0
        %1068 = vmatpush1.bf16.xpose.msra.mxu0 0
        %1069 = vmatprep.subr.bf16.mxu0 0
        %1070 = vmatpush1.bf16.xpose.msra.mxu0 0
        %1071 = vmatprep.subr.bf16.mxu0 0
        %1072 = vmatpush1.bf16.xpose.msra.mxu0 0
        %1073 = vmatprep.subr.bf16.mxu0 0
        %1074 = vmatpush1.bf16.xpose.msra.mxu0 0
        %1075 = vmatprep.subr.bf16.mxu0 0
        %1076 = vmatpush1.bf16.xpose.msra.mxu0 0
        %1077 = vmatprep.subr.bf16.mxu0 0
        %1078 = vmatpush1.bf16.xpose.msra.mxu0 0
        %1079 = vmatprep.subr.bf16.mxu0 0
        %1080 = vmatpush1.bf16.xpose.msra.mxu0 0
        %1081 = vmatprep.subr.bf16.mxu0 0
        %1082 = vmatpush1.bf16.xpose.msra.mxu0 0
        %1083 = vmatprep.subr.bf16.mxu0 0
        %1084 = vmatpush1.bf16.xpose.msra.mxu0 0
        %1085 = vmatprep.subr.bf16.mxu0 0
        %1086 = vmatpush1.bf16.xpose.msra.mxu0 0
        %1087 = vmatprep.subr.bf16.mxu0 0
        %1088 = vmatpush1.bf16.xpose.msra.mxu0 0
        %1089 = vmatprep.subr.bf16.mxu0 0
        %1090 = vmatpush1.bf16.xpose.msra.mxu0 0
        %1091 = vmatprep.subr.bf16.mxu0 0
        %1092 = vmatpush1.bf16.xpose.msra.mxu0 0
        %1093 = vmatprep.subr.bf16.mxu0 0
        %1094 = vmatpush1.bf16.xpose.msra.mxu0 0
        %1095 = vmatprep.subr.bf16.mxu0 0
        %1096 = vmatpush1.bf16.xpose.msra.mxu0 0
        %1097 = vmatprep.mubr.bf16.mxu0 0
        %1098 = vmatmul.mubr.bf16.gmra.mrb[0].mxu0 %v491
        %v1099 = vpop.f32.mrb[0].mxu0
        %v1100 = vadd.f32 0.0, %v1099
        %v1101 = vpop.f32.mrb[0].mxu0
        %v1102 = vpop.f32.mrb[0].mxu0
        %v1103 = vpop.f32.mrb[0].mxu0
        %1104 = vdwg.mxu0
        %v1105 = vsel %vm816, %v1100, -inf
        %1106 = vmax.xlane.f32.xlu0 %v1105
        %v1107 = vpop.xlane.xlu0 %1106
        %v1108 = vsub.f32 %v1100, %v1107
        %v1109 = vmul.f32 %v1108, 1.442695
        %v1110 = vpow.pop %v1109
        %v1111 = vsel %vm816, %v1110, 0.0
        %1112 = vadd.xlane.f32.xlu0 %v1111
        %v1113 = vpop.xlane.xlu0 %1112
        %v1114 = vrcp.pop %v1113
        %v1115 = vpack.c.bf16 %v1110, %v1110
        %v1117 = vsel %vm816, %v1115, 0
        %1119 = vmatprep.subr.bf16.mxu0 0
        %1120 = vmatpush1.bf16.msra.mxu0 %v775
        %1121 = vmatprep.subr.bf16.mxu0 0
        %1122 = vmatpush1.bf16.msra.mxu0 0
        %1123 = vmatprep.subr.bf16.mxu0 0
        %1124 = vmatpush1.bf16.msra.mxu0 0
        %1125 = vmatprep.subr.bf16.mxu0 0
        %1126 = vmatpush1.bf16.msra.mxu0 0
        %1127 = vmatprep.subr.bf16.mxu0 0
        %1128 = vmatpush1.bf16.msra.mxu0 0
        %1129 = vmatprep.subr.bf16.mxu0 0
        %1130 = vmatpush1.bf16.msra.mxu0 0
        %1131 = vmatprep.subr.bf16.mxu0 0
        %1132 = vmatpush1.bf16.msra.mxu0 0
        %1133 = vmatprep.subr.bf16.mxu0 0
        %1134 = vmatpush1.bf16.msra.mxu0 0
        %1135 = vmatprep.subr.bf16.mxu0 0
        %1136 = vmatpush1.bf16.msra.mxu0 0
        %1137 = vmatprep.subr.bf16.mxu0 0
        %1138 = vmatpush1.bf16.msra.mxu0 0
        %1139 = vmatprep.subr.bf16.mxu0 0
        %1140 = vmatpush1.bf16.msra.mxu0 0
        %1141 = vmatprep.subr.bf16.mxu0 0
        %1142 = vmatpush1.bf16.msra.mxu0 0
        %1143 = vmatprep.subr.bf16.mxu0 0
        %1144 = vmatpush1.bf16.msra.mxu0 0
        %1145 = vmatprep.subr.bf16.mxu0 0
        %1146 = vmatpush1.bf16.msra.mxu0 0
        %1147 = vmatprep.subr.bf16.mxu0 0
        %1148 = vmatpush1.bf16.msra.mxu0 0
        %1149 = vmatprep.subr.bf16.mxu0 0
        %1150 = vmatpush1.bf16.msra.mxu0 0
        %1151 = vmatprep.mubr.bf16.mxu0 0
        %1152 = vmatmul.mubr.bf16.gmra.mrb[0].mxu0 %v1117
        %v1153 = vpop.f32.mrb[0].mxu0
        %v1154 = vadd.f32 0.0, %v1153
        %v1155 = vpop.f32.mrb[0].mxu0
        %v1156 = vpop.f32.mrb[0].mxu0
        %v1157 = vpop.f32.mrb[0].mxu0
        %1158 = vdwg.mxu0
        %v1159 = vmul.f32 %v1154, %v1114
        %1160 = vst [vmem:[#allocation2 + $0x18] sm:$0xff] %v1159
        %v1161 = vld [vmem:[#allocation2] sm:$0xff]
        %v1162 = vld [vmem:[#allocation2 + $0x8] sm:$0xff]
        %v1163 = vld [vmem:[#allocation2 + $0x10] sm:$0xff]
        %v1164 = vld [vmem:[#allocation2 + $0x18] sm:$0xff]
        %v1165 = vpack.c.bf16 %v1161, %v1161
        %v1166 = vpack.c.bf16 %v1162, %v1162
        %v1167 = vpack.c.bf16 %v1163, %v1163
        %v1168 = vpack.c.bf16 %v1164, %v1164
        %v1169 = vld [vmem:[#allocation11] sm:$0xf]
        %v1170 = vld [vmem:[#allocation11 + $0x4] sm:$0xf]
        %v1171 = vld [vmem:[#allocation11 + $0x8] sm:$0xf]
        %v1172 = vld [vmem:[#allocation11 + $0xc] sm:$0xf]
        %v1173 = vld [vmem:[#allocation11 + $0x10] sm:$0xf]
        %v1174 = vld [vmem:[#allocation11 + $0x14] sm:$0xf]
        %v1175 = vld [vmem:[#allocation11 + $0x18] sm:$0xf]
        %v1176 = vld [vmem:[#allocation11 + $0x1c] sm:$0xf]
        %v1177 = vld [vmem:[#allocation11 + $0x20] sm:$0xf]
        %v1178 = vld [vmem:[#allocation11 + $0x24] sm:$0xf]
        %v1179 = vld [vmem:[#allocation11 + $0x28] sm:$0xf]
        %v1180 = vld [vmem:[#allocation11 + $0x2c] sm:$0xf]
        %v1181 = vld [vmem:[#allocation11 + $0x30] sm:$0xf]
        %v1182 = vld [vmem:[#allocation11 + $0x34] sm:$0xf]
        %v1183 = vld [vmem:[#allocation11 + $0x38] sm:$0xf]
        %v1184 = vld [vmem:[#allocation11 + $0x3c] sm:$0xf]
        %v1185 = vld [vmem:[#allocation11 + $0x40] sm:$0xf]
        %v1186 = vld [vmem:[#allocation11 + $0x44] sm:$0xf]
        %v1187 = vld [vmem:[#allocation11 + $0x48] sm:$0xf]
        %v1188 = vld [vmem:[#allocation11 + $0x4c] sm:$0xf]
        %v1189 = vld [vmem:[#allocation11 + $0x50] sm:$0xf]
        %v1190 = vld [vmem:[#allocation11 + $0x54] sm:$0xf]
        %v1191 = vld [vmem:[#allocation11 + $0x58] sm:$0xf]
        %v1192 = vld [vmem:[#allocation11 + $0x5c] sm:$0xf]
        %v1193 = vld [vmem:[#allocation11 + $0x60] sm:$0xf]
        %v1194 = vld [vmem:[#allocation11 + $0x64] sm:$0xf]
        %v1195 = vld [vmem:[#allocation11 + $0x68] sm:$0xf]
        %v1196 = vld [vmem:[#allocation11 + $0x6c] sm:$0xf]
        %v1197 = vld [vmem:[#allocation11 + $0x70] sm:$0xf]
        %v1198 = vld [vmem:[#allocation11 + $0x74] sm:$0xf]
        %v1199 = vld [vmem:[#allocation11 + $0x78] sm:$0xf]
        %v1200 = vld [vmem:[#allocation11 + $0x7c] sm:$0xf]
        %v1201 = vld [vmem:[#allocation11 + $0x80] sm:$0xf]
        %v1202 = vld [vmem:[#allocation11 + $0x84] sm:$0xf]
        %v1203 = vld [vmem:[#allocation11 + $0x88] sm:$0xf]
        %v1204 = vld [vmem:[#allocation11 + $0x8c] sm:$0xf]
        %v1205 = vld [vmem:[#allocation11 + $0x90] sm:$0xf]
        %v1206 = vld [vmem:[#allocation11 + $0x94] sm:$0xf]
        %v1207 = vld [vmem:[#allocation11 + $0x98] sm:$0xf]
        %v1208 = vld [vmem:[#allocation11 + $0x9c] sm:$0xf]
        %v1209 = vld [vmem:[#allocation11 + $0xa0] sm:$0xf]
        %v1210 = vld [vmem:[#allocation11 + $0xa4] sm:$0xf]
        %v1211 = vld [vmem:[#allocation11 + $0xa8] sm:$0xf]
        %v1212 = vld [vmem:[#allocation11 + $0xac] sm:$0xf]
        %v1213 = vld [vmem:[#allocation11 + $0xb0] sm:$0xf]
        %v1214 = vld [vmem:[#allocation11 + $0xb4] sm:$0xf]
        %v1215 = vld [vmem:[#allocation11 + $0xb8] sm:$0xf]
        %v1216 = vld [vmem:[#allocation11 + $0xbc] sm:$0xf]
        %v1217 = vld [vmem:[#allocation11 + $0xc0] sm:$0xf]
        %v1218 = vld [vmem:[#allocation11 + $0xc4] sm:$0xf]
        %v1219 = vld [vmem:[#allocation11 + $0xc8] sm:$0xf]
        %v1220 = vld [vmem:[#allocation11 + $0xcc] sm:$0xf]
        %v1221 = vld [vmem:[#allocation11 + $0xd0] sm:$0xf]
        %v1222 = vld [vmem:[#allocation11 + $0xd4] sm:$0xf]
        %v1223 = vld [vmem:[#allocation11 + $0xd8] sm:$0xf]
        %v1224 = vld [vmem:[#allocation11 + $0xdc] sm:$0xf]
        %v1225 = vld [vmem:[#allocation11 + $0xe0] sm:$0xf]
        %v1226 = vld [vmem:[#allocation11 + $0xe4] sm:$0xf]
        %v1227 = vld [vmem:[#allocation11 + $0xe8] sm:$0xf]
        %v1228 = vld [vmem:[#allocation11 + $0xec] sm:$0xf]
        %v1229 = vld [vmem:[#allocation11 + $0xf0] sm:$0xf]
        %v1230 = vld [vmem:[#allocation11 + $0xf4] sm:$0xf]
        %v1231 = vld [vmem:[#allocation11 + $0xf8] sm:$0xf]
        %v1232 = vld [vmem:[#allocation11 + $0xfc] sm:$0xf]
        %v1233 = vld [vmem:[%s5] sm:$0x1]
        %v1235 = vlaneseq
        %v1236 = vshrl.u32 %v1235, 7
        %v1237 = vsub.s32 0, %v1236
        %v1238 = vrot.slane %v1233, %v1237
        %v1304 = vunpack.c.l.b16 %v1169
        %v1305 = vunpack.c.l.b16 %v1170
        %v1306 = vunpack.c.l.b16 %v1171
        %v1307 = vunpack.c.l.b16 %v1172
        %v1308 = vunpack.c.l.b16 %v1173
        %v1309 = vunpack.c.l.b16 %v1174
        %v1310 = vunpack.c.l.b16 %v1175
        %v1311 = vunpack.c.l.b16 %v1176
        %v1312 = vunpack.c.l.b16 %v1177
        %v1313 = vunpack.c.l.b16 %v1178
        %v1314 = vunpack.c.l.b16 %v1179
        %v1315 = vunpack.c.l.b16 %v1180
        %v1316 = vunpack.c.l.b16 %v1181
        %v1317 = vunpack.c.l.b16 %v1182
        %v1318 = vunpack.c.l.b16 %v1183
        %v1319 = vunpack.c.l.b16 %v1184
        %v1320 = vunpack.c.l.b16 %v1185
        %v1321 = vunpack.c.l.b16 %v1186
        %v1322 = vunpack.c.l.b16 %v1187
        %v1323 = vunpack.c.l.b16 %v1188
        %v1324 = vunpack.c.l.b16 %v1189
        %v1325 = vunpack.c.l.b16 %v1190
        %v1326 = vunpack.c.l.b16 %v1191
        %v1327 = vunpack.c.l.b16 %v1192
        %v1328 = vunpack.c.l.b16 %v1193
        %v1329 = vunpack.c.l.b16 %v1194
        %v1330 = vunpack.c.l.b16 %v1195
        %v1331 = vunpack.c.l.b16 %v1196
        %v1332 = vunpack.c.l.b16 %v1197
        %v1333 = vunpack.c.l.b16 %v1198
        %v1334 = vunpack.c.l.b16 %v1199
        %v1335 = vunpack.c.l.b16 %v1200
        %v1336 = vunpack.c.l.b16 %v1201
        %v1337 = vunpack.c.l.b16 %v1202
        %v1338 = vunpack.c.l.b16 %v1203
        %v1339 = vunpack.c.l.b16 %v1204
        %v1340 = vunpack.c.l.b16 %v1205
        %v1341 = vunpack.c.l.b16 %v1206
        %v1342 = vunpack.c.l.b16 %v1207
        %v1343 = vunpack.c.l.b16 %v1208
        %v1344 = vunpack.c.l.b16 %v1209
        %v1345 = vunpack.c.l.b16 %v1210
        %v1346 = vunpack.c.l.b16 %v1211
        %v1347 = vunpack.c.l.b16 %v1212
        %v1348 = vunpack.c.l.b16 %v1213
        %v1349 = vunpack.c.l.b16 %v1214
        %v1350 = vunpack.c.l.b16 %v1215
        %v1351 = vunpack.c.l.b16 %v1216
        %v1352 = vunpack.c.l.b16 %v1217
        %v1353 = vunpack.c.l.b16 %v1218
        %v1354 = vunpack.c.l.b16 %v1219
        %v1355 = vunpack.c.l.b16 %v1220
        %v1356 = vunpack.c.l.b16 %v1221
        %v1357 = vunpack.c.l.b16 %v1222
        %v1358 = vunpack.c.l.b16 %v1223
        %v1359 = vunpack.c.l.b16 %v1224
        %v1360 = vunpack.c.l.b16 %v1225
        %v1361 = vunpack.c.l.b16 %v1226
        %v1362 = vunpack.c.l.b16 %v1227
        %v1363 = vunpack.c.l.b16 %v1228
        %v1364 = vunpack.c.l.b16 %v1229
        %v1365 = vunpack.c.l.b16 %v1230
        %v1366 = vunpack.c.l.b16 %v1231
        %v1367 = vunpack.c.l.b16 %v1232
        %v1368 = vpack.c.b16 %v1305, %v1304
        %v1369 = vpack.c.b16 %v1307, %v1306
        %v1370 = vpack.c.b16 %v1309, %v1308
        %v1371 = vpack.c.b16 %v1311, %v1310
        %v1372 = vpack.c.b16 %v1313, %v1312
        %v1373 = vpack.c.b16 %v1315, %v1314
        %v1374 = vpack.c.b16 %v1317, %v1316
        %v1375 = vpack.c.b16 %v1319, %v1318
        %v1376 = vpack.c.b16 %v1321, %v1320
        %v1377 = vpack.c.b16 %v1323, %v1322
        %v1378 = vpack.c.b16 %v1325, %v1324
        %v1379 = vpack.c.b16 %v1327, %v1326
        %v1380 = vpack.c.b16 %v1329, %v1328
        %v1381 = vpack.c.b16 %v1331, %v1330
        %v1382 = vpack.c.b16 %v1333, %v1332
        %v1383 = vpack.c.b16 %v1335, %v1334
        %v1384 = vpack.c.b16 %v1337, %v1336
        %v1385 = vpack.c.b16 %v1339, %v1338
        %v1386 = vpack.c.b16 %v1341, %v1340
        %v1387 = vpack.c.b16 %v1343, %v1342
        %v1388 = vpack.c.b16 %v1345, %v1344
        %v1389 = vpack.c.b16 %v1347, %v1346
        %v1390 = vpack.c.b16 %v1349, %v1348
        %v1391 = vpack.c.b16 %v1351, %v1350
        %v1392 = vpack.c.b16 %v1353, %v1352
        %v1393 = vpack.c.b16 %v1355, %v1354
        %v1394 = vpack.c.b16 %v1357, %v1356
        %v1395 = vpack.c.b16 %v1359, %v1358
        %v1396 = vpack.c.b16 %v1361, %v1360
        %v1397 = vpack.c.b16 %v1363, %v1362
        %v1398 = vpack.c.b16 %v1365, %v1364
        %v1399 = vpack.c.b16 %v1367, %v1366
        %1432 = vmatprep.subr.bf16.mxu0 0
        %1433 = vmatpush1.bf16.msra.mxu0 %v1368
        %1434 = vmatprep.subr.bf16.mxu0 0
        %1435 = vmatpush1.bf16.msra.mxu0 %v1369
        %1436 = vmatprep.subr.bf16.mxu0 0
        %1437 = vmatpush1.bf16.msra.mxu0 %v1370
        %1438 = vmatprep.subr.bf16.mxu0 0
        %1439 = vmatpush1.bf16.msra.mxu0 %v1371
        %1440 = vmatprep.subr.bf16.mxu0 0
        %1441 = vmatpush1.bf16.msra.mxu0 %v1372
        %1442 = vmatprep.subr.bf16.mxu0 0
        %1443 = vmatpush1.bf16.msra.mxu0 %v1373
        %1444 = vmatprep.subr.bf16.mxu0 0
        %1445 = vmatpush1.bf16.msra.mxu0 %v1374
        %1446 = vmatprep.subr.bf16.mxu0 0
        %1447 = vmatpush1.bf16.msra.mxu0 %v1375
        %1448 = vmatprep.subr.bf16.mxu0 0
        %1449 = vmatpush1.bf16.msra.mxu0 %v1376
        %1450 = vmatprep.subr.bf16.mxu0 0
        %1451 = vmatpush1.bf16.msra.mxu0 %v1377
        %1452 = vmatprep.subr.bf16.mxu0 0
        %1453 = vmatpush1.bf16.msra.mxu0 %v1378
        %1454 = vmatprep.subr.bf16.mxu0 0
        %1455 = vmatpush1.bf16.msra.mxu0 %v1379
        %1456 = vmatprep.subr.bf16.mxu0 0
        %1457 = vmatpush1.bf16.msra.mxu0 %v1380
        %1458 = vmatprep.subr.bf16.mxu0 0
        %1459 = vmatpush1.bf16.msra.mxu0 %v1381
        %1460 = vmatprep.subr.bf16.mxu0 0
        %1461 = vmatpush1.bf16.msra.mxu0 %v1382
        %1462 = vmatprep.subr.bf16.mxu0 0
        %1463 = vmatpush1.bf16.msra.mxu0 %v1383
        %1464 = vmatprep.mubr.bf16.mxu0 %v1166
        %1465 = vmatmul.mubr.bf16.gmra.mrb[0].mxu0 %v1165
        %v1466 = vpop.f32.mrb[0].mxu0
        %v1467 = vadd.f32 %v1238, %v1466
        %v1468 = vpop.f32.mrb[0].mxu0
        %v1469 = vpop.f32.mrb[0].mxu0
        %v1470 = vpop.f32.mrb[0].mxu0
        %1471 = vdwg.mxu0
        %1472 = vmatprep.subr.bf16.mxu0 0
        %1473 = vmatpush1.bf16.msra.mxu0 %v1384
        %1474 = vmatprep.subr.bf16.mxu0 0
        %1475 = vmatpush1.bf16.msra.mxu0 %v1385
        %1476 = vmatprep.subr.bf16.mxu0 0
        %1477 = vmatpush1.bf16.msra.mxu0 %v1386
        %1478 = vmatprep.subr.bf16.mxu0 0
        %1479 = vmatpush1.bf16.msra.mxu0 %v1387
        %1480 = vmatprep.subr.bf16.mxu0 0
        %1481 = vmatpush1.bf16.msra.mxu0 %v1388
        %1482 = vmatprep.subr.bf16.mxu0 0
        %1483 = vmatpush1.bf16.msra.mxu0 %v1389
        %1484 = vmatprep.subr.bf16.mxu0 0
        %1485 = vmatpush1.bf16.msra.mxu0 %v1390
        %1486 = vmatprep.subr.bf16.mxu0 0
        %1487 = vmatpush1.bf16.msra.mxu0 %v1391
        %1488 = vmatprep.subr.bf16.mxu0 0
        %1489 = vmatpush1.bf16.msra.mxu0 %v1392
        %1490 = vmatprep.subr.bf16.mxu0 0
        %1491 = vmatpush1.bf16.msra.mxu0 %v1393
        %1492 = vmatprep.subr.bf16.mxu0 0
        %1493 = vmatpush1.bf16.msra.mxu0 %v1394
        %1494 = vmatprep.subr.bf16.mxu0 0
        %1495 = vmatpush1.bf16.msra.mxu0 %v1395
        %1496 = vmatprep.subr.bf16.mxu0 0
        %1497 = vmatpush1.bf16.msra.mxu0 %v1396
        %1498 = vmatprep.subr.bf16.mxu0 0
        %1499 = vmatpush1.bf16.msra.mxu0 %v1397
        %1500 = vmatprep.subr.bf16.mxu0 0
        %1501 = vmatpush1.bf16.msra.mxu0 %v1398
        %1502 = vmatprep.subr.bf16.mxu0 0
        %1503 = vmatpush1.bf16.msra.mxu0 %v1399
        %1504 = vmatprep.mubr.bf16.mxu0 %v1168
        %1505 = vmatmul.mubr.bf16.gmra.mrb[0].mxu0 %v1167
        %v1506 = vpop.f32.mrb[0].mxu0
        %v1507 = vadd.f32 %v1467, %v1506
        %v1508 = vpop.f32.mrb[0].mxu0
        %v1509 = vpop.f32.mrb[0].mxu0
        %v1510 = vpop.f32.mrb[0].mxu0
        %1511 = vdwg.mxu0
        %1512 = vst [vmem:[%s349] sm:$0xff] %v1507
        %s1513 = sand.u32 %s171, 1
        %s1514 = scalar_lea.sflag [#allocation5], %s1513
        %s1515 = sand.u32 %s171, 1
        %s1516 = smul.addr %s1515, 8
        %s1517 = scalar_lea.vmem [#allocation12], %s1516
        // Predicated region
        $region65: #{tpu_custom_call.1} parent=43 // pred_check
          %p1518 = pneg %p181
        $region66: #{tpu_custom_call.1} parent=43 // pred_check_branch
          %1520 = sbr.rel (%p1518) target = $region68
        $region67: #{tpu_custom_call.1} parent=43 // pred_region
          %s1522 = ssub.s32 128, 128
          %1523 = vsyncadd %s1514, %s1522
          %s1524 = smul.addr %s27, 128
          %s1525 = scalar_lea.hbm %s6, %s1524
          %s1527 = sshll.u32 %s1517, 4
          %s1528 = int_to_ptr.vmem [resolvable:$true] %s1527
          %1530 = dma.vmem_to_hbm [thread:$0]  %s1528, 128, %s1525, %s1514
        $region68: #{tpu_custom_call.1} parent=43 // pred_fallthru
          _
      $region44: #{tpu_custom_call.1} parent=5 // pred_fallthru
        _
      %p1531 = scmp.le.s32.totalorder 2, %s22
      // Predicated region
      $region69: #{tpu_custom_call.1} parent=5 // pred_check
        %p1532 = pneg %p1531
      $region70: #{tpu_custom_call.1} parent=5 // pred_check_branch
        %1534 = sbr.rel (%p1532) target = $region72
      $region71: #{tpu_custom_call.1} parent=5 // pred_region
        %s1535 = ssub.s32 %s22, 2
        // Predicated region
        $region73: #{tpu_custom_call.1} parent=71 // pred_check
          %p1536 = pneg %p187
        $region74: #{tpu_custom_call.1} parent=71 // pred_check_branch
          %1538 = sbr.rel (%p1536) target = $region76
        $region75: #{tpu_custom_call.1} parent=71 // pred_region
          %s1539 = sand.u32 %s172, 1
          %s1540 = scalar_lea.sflag [#allocation5], %s1539
          %s1541 = sand.u32 %s172, 1
          %s1542 = smul.addr %s1541, 8
          %s1543 = scalar_lea.vmem [#allocation12], %s1542
          %1544 = dma.done %s1540, 128
        $region76: #{tpu_custom_call.1} parent=71 // pred_fallthru
          _
      $region72: #{tpu_custom_call.1} parent=5 // pred_fallthru
        _
    $region6: #{tpu_custom_call.1} parent=1 // loop_footer
      %s26 = sadd.s32 1, %s22
    $region7: #{tpu_custom_call.1} parent=1 // loop_footer_branch
      %21 = sbr.rel target = $region3
    $region8: #{tpu_custom_call.1} parent=1 // loop_exit
      _
    %1545 = vsyncpa [#allocation4], 1
    %s1546 = scalar_lea.sflag [#allocation4], 1
    %1547 = vsyncpa %s1546, 1
    %1548 = vsyncpa [#allocation7], 1
    %s1549 = scalar_lea.sflag [#allocation7], 1
    %1550 = vsyncpa %s1549, 1
    %1551 = vsyncpa [#allocation10], 1
    %1552 = vsyncpa [#allocation5], 1
    %s1553 = scalar_lea.sflag [#allocation5], 1
    %1554 = vsyncpa %s1553, 1

</llo_original>
